<compile_context>
chip_gen: v7x
topology: tpu7x:2x2x1
jax: 0.10.0
libtpu: 0.0.40
codegen_flags: <defaults>
</compile_context>

<pallas_src>
import math
import functools

import jax
import jax.numpy as jnp
from jax.experimental import pallas as pl
from jax.experimental.pallas import tpu as pltpu

# ---- Small synthetic BERT config (bert-base-like structure, scaled down) ----
VOCAB = 128
TYPE_VOCAB = 2
MAX_POS = 32
HIDDEN = 32
N_HEADS = 2
HEAD_DIM = HIDDEN // N_HEADS
INTER = 64
N_LAYERS = 2
LN_EPS = 1e-12

_VMEM = pltpu.MemorySpace.VMEM
_SQRT1_2 = 0.7071067811865476


def _layer_norm(x, gamma, beta, eps=LN_EPS):
    # x: (S, H) f32; gamma/beta: (1, H) f32
    mean = jnp.mean(x, axis=-1, keepdims=True)
    var = jnp.mean(jnp.square(x - mean), axis=-1, keepdims=True)
    return (x - mean) * jax.lax.rsqrt(var + eps) * gamma + beta


def _gelu_erf(x):
    # HF BERT uses exact (erf) GELU. erf is evaluated with the Abramowitz-Stegun
    # 7.1.26 rational approximation (max abs err ~1.5e-7) using only
    # mul/add/abs/select + one EUP exp, which lower cleanly on all TPU gens.
    z = x * _SQRT1_2
    az = jnp.abs(z)
    t = 1.0 / (1.0 + 0.3275911 * az)
    poly = ((((1.061405429 * t - 1.453152027) * t + 1.421413741) * t
             - 0.284496736) * t + 0.254829592) * t
    erf_abs = 1.0 - poly * jnp.exp(-az * az)
    erf_z = jnp.where(z >= 0.0, erf_abs, -erf_abs)
    return 0.5 * x * (1.0 + erf_z)


# --------------------------- Fused Pallas kernel ---------------------------
# Grid = (batch, layer): batch "parallel", layer "arbitrary".

def _encoder_kernel(n_heads, head_dim,
                    emb_ref, mask_ref, eg_ref, eb_ref,
                    wqkv_ref, bqkv_ref, wo_ref, bo_ref, ln1g_ref, ln1b_ref,
                    w1_ref, fb1_ref, w2_ref, fb2_ref, ln2g_ref, ln2b_ref,
                    o_ref):
    S, H = o_ref.shape
    scale = 1.0 / math.sqrt(head_dim)

    # Embedding LayerNorm once per sequence, before the first layer.
    @pl.when(pl.program_id(1) == 0)
    def _():
        o_ref[...] = _layer_norm(emb_ref[...], eg_ref[...], eb_ref[...])

    # HF extended attention mask built in-kernel: (1 - mask) * -10000 additive
    # bias over key positions of THIS sequence only.
    attn_bias = jnp.where(mask_ref[0] > 0.5, 0.0, -10000.0)          # (1, S)

    x = o_ref[...]                                                   # (S, H) f32 residual
    x_bf = x.astype(jnp.bfloat16)

    # Fused Q/K/V projection: one MXU matmul with a 3H-wide (lane) output.
    qkv = jnp.dot(x_bf, wqkv_ref[0],
                  preferred_element_type=jnp.float32) + bqkv_ref[0]  # (S, 3H)
    q = qkv[:, 0 * H:1 * H] * scale            # fold 1/sqrt(Dh) into q
    k = qkv[:, 1 * H:2 * H]
    v = qkv[:, 2 * H:3 * H]

    # Per-head attention, strictly within this sequence (no cross-batch work).
    ctx_heads = []
    for h in range(n_heads):
        lo, hi = h * head_dim, (h + 1) * head_dim
        qh = q[:, lo:hi].astype(jnp.bfloat16)                        # (S, Dh)
        kh = k[:, lo:hi].astype(jnp.bfloat16)
        vh = v[:, lo:hi].astype(jnp.bfloat16)
        s = jax.lax.dot_general(qh, kh, (((1,), (1,)), ((), ())),
                                preferred_element_type=jnp.float32)  # (S, S)
        s = s + attn_bias
        s = s - jnp.max(s, axis=-1, keepdims=True)
        p = jnp.exp(s)
        p = p / jnp.sum(p, axis=-1, keepdims=True)                   # exact normalize (HF parity)
        ctx_heads.append(jnp.dot(p.astype(jnp.bfloat16), vh,
                                 preferred_element_type=jnp.float32))  # (S, Dh)

    # concat(heads) followed by ONE (H, H) output projection.
    ctx = jnp.concatenate(ctx_heads, axis=-1).astype(jnp.bfloat16)   # (S, H)
    attn_out = jnp.dot(ctx, wo_ref[0],
                       preferred_element_type=jnp.float32) + bo_ref[0]

    x1 = _layer_norm(x + attn_out, ln1g_ref[0], ln1b_ref[0])

    # Feed-forward (exact GELU) + residual + LayerNorm; residual stays in o_ref.
    h1 = jnp.dot(x1.astype(jnp.bfloat16), w1_ref[0],
                 preferred_element_type=jnp.float32) + fb1_ref[0]
    h1 = _gelu_erf(h1)
    h2 = jnp.dot(h1.astype(jnp.bfloat16), w2_ref[0],
                 preferred_element_type=jnp.float32) + fb2_ref[0]
    o_ref[...] = _layer_norm(x1 + h2, ln2g_ref[0], ln2b_ref[0])


def _layer_spec(arr):
    # Per-layer weight block: leading layer dim indexed by the layer grid axis,
    # full trailing dims (streams through VMEM, auto double-buffered).
    nd = arr.ndim
    return pl.BlockSpec((1,) + arr.shape[1:],
                        lambda b, l: (l,) + (0,) * (nd - 1),
                        memory_space=_VMEM)


def _bert_encoder_fused(emb_flat, mask3, params):
    B = mask3.shape[0]
    S = mask3.shape[2]
    N, H = emb_flat.shape
    L = params['wqkv'].shape[0]
    I = params['w1'].shape[-1]

    per_layer = [params[k] for k in
                 ('wqkv', 'bqkv', 'wo', 'bo', 'ln1_g', 'ln1_b',
                  'w1', 'b1', 'w2', 'b2', 'ln2_g', 'ln2_b')]

    in_specs = [
        pl.BlockSpec((S, H), lambda b, l: (b, 0), memory_space=_VMEM),        # emb (per-sequence rows)
        pl.BlockSpec((1, 1, S), lambda b, l: (b, 0, 0), memory_space=_VMEM),  # attention mask row
        pl.BlockSpec((1, H), lambda b, l: (0, 0), memory_space=_VMEM),        # emb LN gamma
        pl.BlockSpec((1, H), lambda b, l: (0, 0), memory_space=_VMEM),        # emb LN beta
    ] + [_layer_spec(a) for a in per_layer]

    out_spec = pl.BlockSpec((S, H), lambda b, l: (b, 0), memory_space=_VMEM)

    # Advisory cost estimate for XLA scheduling around the custom call.
    flops = L * (2 * N * H * 3 * H                          # fused QKV
                 + 2 * B * N_HEADS * S * S * HEAD_DIM * 2   # scores + context
                 + 2 * N * H * H                            # output projection
                 + 2 * N * H * I * 2)                       # FFN up + down
    transcendentals = L * (B * N_HEADS * S * S + N * I)     # softmax exp + gelu exp
    bytes_accessed = (emb_flat.size * emb_flat.dtype.itemsize
                      + mask3.size * mask3.dtype.itemsize
                      + N * H * 4
                      + params['emb_ln_g'].size * 4 + params['emb_ln_b'].size * 4
                      + sum(int(a.size) * a.dtype.itemsize for a in per_layer))

    kernel = functools.partial(_encoder_kernel, N_HEADS, HEAD_DIM)

    return pl.pallas_call(
        kernel,
        out_shape=jax.ShapeDtypeStruct((N, H), jnp.float32),
        grid_spec=pltpu.PrefetchScalarGridSpec(
            num_scalar_prefetch=0,
            grid=(B, L),
            in_specs=in_specs,
            out_specs=out_spec),
        compiler_params=pltpu.CompilerParams(
            dimension_semantics=("parallel", "arbitrary"),
            # Toy sizes need only KBs of VMEM; at real BERT scale retune per
            # generation (leave double-buffer headroom under 64 MiB on v7x).
            vmem_limit_bytes=32 * 1024 * 1024),
        cost_estimate=pl.CostEstimate(flops=int(flops),
                                      transcendentals=int(transcendentals),
                                      bytes_accessed=int(bytes_accessed)),
    )(emb_flat, mask3,
      params['emb_ln_g'], params['emb_ln_b'], *per_layer)


# --------------------------- Parameters ---------------------------

def init_params(key):
    L, H, I = N_LAYERS, HIDDEN, INTER
    keys = jax.random.split(key, 7)

    def nrm(k, shape, dtype=jnp.float32):
        return (0.02 * jax.random.normal(k, shape)).astype(dtype)

    return {
        'word_emb': nrm(keys[0], (VOCAB, H)),
        'pos_emb': nrm(keys[1], (MAX_POS, H)),
        'type_emb': nrm(keys[2], (TYPE_VOCAB, H)),
        'emb_ln_g': jnp.ones((1, H), jnp.float32),
        'emb_ln_b': jnp.zeros((1, H), jnp.float32),
        # Fused QKV weight: columns ordered [Wq | Wk | Wv] (each in HF's
        # head-major column layout), stored bf16 for the MXU.
        # TODO(synk): bf16 weight storage adds weight-quantization error vs an
        # f32 PyTorch reference (MXU inputs are cast to bf16 either way).
        'wqkv': nrm(keys[3], (L, H, 3 * H), jnp.bfloat16),
        'bqkv': jnp.zeros((L, 1, 3 * H), jnp.float32),
        'wo': nrm(keys[4], (L, H, H), jnp.bfloat16),
        'bo': jnp.zeros((L, 1, H), jnp.float32),
        'ln1_g': jnp.ones((L, 1, H), jnp.float32),
        'ln1_b': jnp.zeros((L, 1, H), jnp.float32),
        'w1': nrm(keys[5], (L, H, I), jnp.bfloat16),
        'b1': jnp.zeros((L, 1, I), jnp.float32),
        'w2': nrm(keys[6], (L, I, H), jnp.bfloat16),
        'b2': jnp.zeros((L, 1, H), jnp.float32),
        'ln2_g': jnp.ones((L, 1, H), jnp.float32),
        'ln2_b': jnp.zeros((L, 1, H), jnp.float32),
    }


# ---------------- Forward (matches BertTextEncoder.forward) ----------------

def bert_text_encoder_forward(text, params):
    """text: (B, 3, S) — channel 0: input_ids, 1: attention_mask, 2: token_type_ids.
    Returns last_hidden_states: (B, S, HIDDEN)."""
    input_ids = text[:, 0, :].astype(jnp.int32)      # .long()
    input_mask = text[:, 1, :].astype(jnp.float32)   # .float()
    segment_ids = text[:, 2, :].astype(jnp.int32)    # .long()
    B, S = input_ids.shape

    # Embedding lookups are data-dependent gathers -> plain JAX glue; the
    # embedding LayerNorm and all encoder layers run inside the Pallas kernel.
    emb = (params['word_emb'][input_ids]
           + params['pos_emb'][jnp.arange(S)][None, :, :]
           + params['type_emb'][segment_ids])
    emb_flat = emb.reshape(B * S, HIDDEN)
    mask3 = input_mask.reshape(B, 1, S)

    out_flat = _bert_encoder_fused(emb_flat, mask3, params)
    return out_flat.reshape(B, S, HIDDEN)


if __name__ == "__main__":
    key = jax.random.PRNGKey(0)
    pkey, ikey = jax.random.split(key)
    params = init_params(pkey)

    B, S = 2, 8
    ids = jax.random.randint(ikey, (B, S), 0, VOCAB).astype(jnp.float32)
    mask = jnp.ones((B, S), jnp.float32)
    mask = mask.at[0, -1].set(0.0).at[1, -2:].set(0.0)   # some padding positions
    segs = jnp.concatenate([jnp.zeros((B, S // 2), jnp.float32),
                            jnp.ones((B, S // 2), jnp.float32)], axis=1)
    text = jnp.stack([ids, mask, segs], axis=1)          # (B, 3, S)

    out = bert_text_encoder_forward(text, params)
    out = jax.block_until_ready(out)
    assert out.shape == (B, S, HIDDEN)
    assert bool(jnp.all(jnp.isfinite(out)))
    print("KERNEL_OK")
</pallas_src>

<mosaic_0001>
module attributes {stable_mosaic.version = 11 : i64} {
  func.func @_encoder_kernel(%arg0: i32, %arg1: i32, %arg2: memref<8x32xf32, #tpu.memory_space<vmem>>, %arg3: memref<1x1x8xf32, #tpu.memory_space<vmem>>, %arg4: memref<1x32xf32, #tpu.memory_space<vmem>>, %arg5: memref<1x32xf32, #tpu.memory_space<vmem>>, %arg6: memref<1x32x96xbf16, #tpu.memory_space<vmem>>, %arg7: memref<1x1x96xf32, #tpu.memory_space<vmem>>, %arg8: memref<1x32x32xbf16, #tpu.memory_space<vmem>>, %arg9: memref<1x1x32xf32, #tpu.memory_space<vmem>>, %arg10: memref<1x1x32xf32, #tpu.memory_space<vmem>>, %arg11: memref<1x1x32xf32, #tpu.memory_space<vmem>>, %arg12: memref<1x32x64xbf16, #tpu.memory_space<vmem>>, %arg13: memref<1x1x64xf32, #tpu.memory_space<vmem>>, %arg14: memref<1x64x32xbf16, #tpu.memory_space<vmem>>, %arg15: memref<1x1x32xf32, #tpu.memory_space<vmem>>, %arg16: memref<1x1x32xf32, #tpu.memory_space<vmem>>, %arg17: memref<1x1x32xf32, #tpu.memory_space<vmem>>, %arg18: memref<8x32xf32, #tpu.memory_space<vmem>>) attributes {dimension_semantics = [#tpu.dimension_semantics<parallel>, #tpu.dimension_semantics<arbitrary>], iteration_bounds = array<i64: 2, 2>, scalar_prefetch = 0 : i64, scratch_operands = 0 : i64, tpu.core_type = #tpu.core_type<tc>, window_params = [{transform_indices = @transform_0, window_bounds = array<i64: 8, 32>}, {transform_indices = @transform_1, window_bounds = array<i64: 1, 1, 8>}, {pipeline_mode = #tpu.pipeline_mode<synchronous>, transform_indices = @transform_2, window_bounds = array<i64: 1, 32>}, {pipeline_mode = #tpu.pipeline_mode<synchronous>, transform_indices = @transform_3, window_bounds = array<i64: 1, 32>}, {transform_indices = @transform_4, window_bounds = array<i64: 1, 32, 96>}, {transform_indices = @transform_5, window_bounds = array<i64: 1, 1, 96>}, {transform_indices = @transform_6, window_bounds = array<i64: 1, 32, 32>}, {transform_indices = @transform_7, window_bounds = array<i64: 1, 1, 32>}, {transform_indices = @transform_8, window_bounds = array<i64: 1, 1, 32>}, {transform_indices = @transform_9, window_bounds = array<i64: 1, 1, 32>}, {transform_indices = @transform_10, window_bounds = array<i64: 1, 32, 64>}, {transform_indices = @transform_11, window_bounds = array<i64: 1, 1, 64>}, {transform_indices = @transform_12, window_bounds = array<i64: 1, 64, 32>}, {transform_indices = @transform_13, window_bounds = array<i64: 1, 1, 32>}, {transform_indices = @transform_14, window_bounds = array<i64: 1, 1, 32>}, {transform_indices = @transform_15, window_bounds = array<i64: 1, 1, 32>}, {transform_indices = @transform_16, window_bounds = array<i64: 8, 32>}]} {
    %c0_i32 = arith.constant 0 : i32
    %0 = arith.cmpi eq, %arg1, %c0_i32 : i32
    %1 = arith.extui %0 : i1 to i32
    %c0_i32_0 = arith.constant 0 : i32
    %2 = arith.cmpi ne, %1, %c0_i32_0 : i32
    scf.if %2 {
      %c0_83 = arith.constant 0 : index
      %c0_84 = arith.constant 0 : index
      %184 = vector.load %arg2[%c0_83, %c0_84] : memref<8x32xf32, #tpu.memory_space<vmem>>, vector<8x32xf32>
      %c0_85 = arith.constant 0 : index
      %c0_86 = arith.constant 0 : index
      %185 = vector.load %arg4[%c0_85, %c0_86] : memref<1x32xf32, #tpu.memory_space<vmem>>, vector<1x32xf32>
      %c0_87 = arith.constant 0 : index
      %c0_88 = arith.constant 0 : index
      %186 = vector.load %arg5[%c0_87, %c0_88] : memref<1x32xf32, #tpu.memory_space<vmem>>, vector<1x32xf32>
      %cst_89 = arith.constant dense<0.000000e+00> : vector<8xf32>
      %187 = vector.multi_reduction <add>, %184, %cst_89 [1] : vector<8x32xf32> to vector<8xf32>
      %188 = vector.shape_cast %187 : vector<8xf32> to vector<8x1xf32>
      %cst_90 = arith.constant 3.200000e+01 : f32
      %189 = vector.broadcast %cst_90 : f32 to vector<8x1xf32>
      %190 = arith.divf %188, %189 : vector<8x1xf32>
      %191 = vector.broadcast %190 : vector<8x1xf32> to vector<8x32xf32>
      %192 = arith.subf %184, %191 : vector<8x32xf32>
      %193 = arith.mulf %192, %192 : vector<8x32xf32>
      %cst_91 = arith.constant dense<0.000000e+00> : vector<8xf32>
      %194 = vector.multi_reduction <add>, %193, %cst_91 [1] : vector<8x32xf32> to vector<8xf32>
      %195 = vector.shape_cast %194 : vector<8xf32> to vector<8x1xf32>
      %cst_92 = arith.constant 3.200000e+01 : f32
      %196 = vector.broadcast %cst_92 : f32 to vector<8x1xf32>
      %197 = arith.divf %195, %196 : vector<8x1xf32>
      %198 = vector.broadcast %190 : vector<8x1xf32> to vector<8x32xf32>
      %199 = arith.subf %184, %198 : vector<8x32xf32>
      %cst_93 = arith.constant 9.99999996E-13 : f32
      %200 = vector.broadcast %cst_93 : f32 to vector<8x1xf32>
      %201 = arith.addf %197, %200 : vector<8x1xf32>
      %202 = math.rsqrt %201 : vector<8x1xf32>
      %203 = vector.broadcast %202 : vector<8x1xf32> to vector<8x32xf32>
      %204 = arith.mulf %199, %203 : vector<8x32xf32>
      %205 = vector.broadcast %185 : vector<1x32xf32> to vector<8x32xf32>
      %206 = arith.mulf %204, %205 : vector<8x32xf32>
      %207 = vector.broadcast %186 : vector<1x32xf32> to vector<8x32xf32>
      %208 = arith.addf %206, %207 : vector<8x32xf32>
      %c0_94 = arith.constant 0 : index
      %c0_95 = arith.constant 0 : index
      %209 = vector.load %arg18[%c0_94, %c0_95] : memref<8x32xf32, #tpu.memory_space<vmem>>, vector<8x32xf32>
      tpu.vector_store %arg18[%c0_94, %c0_95], %208 {strides = array<i32>} : memref<8x32xf32, #tpu.memory_space<vmem>>, vector<8x32xf32>,
    } else {
    }
    %c0 = arith.constant 0 : index
    %c0_1 = arith.constant 0 : index
    %c0_2 = arith.constant 0 : index
    %3 = vector.load %arg3[%c0, %c0_1, %c0_2] : memref<1x1x8xf32, #tpu.memory_space<vmem>>, vector<1x1x8xf32>
    %4 = vector.shape_cast %3 : vector<1x1x8xf32> to vector<1x8xf32>
    %cst = arith.constant 5.000000e-01 : f32
    %5 = vector.broadcast %cst : f32 to vector<1x8xf32>
    %6 = arith.cmpf ogt, %4, %5 : vector<1x8xf32>
    %cst_3 = arith.constant 0.000000e+00 : f32
    %cst_4 = arith.constant -1.000000e+04 : f32
    %7 = vector.broadcast %cst_3 : f32 to vector<1x8xf32>
    %8 = vector.broadcast %cst_4 : f32 to vector<1x8xf32>
    %9 = arith.select %6, %7, %8 : vector<1x8xi1>, vector<1x8xf32>
    %c0_5 = arith.constant 0 : index
    %c0_6 = arith.constant 0 : index
    %10 = vector.load %arg18[%c0_5, %c0_6] : memref<8x32xf32, #tpu.memory_space<vmem>>, vector<8x32xf32>
    %11 = arith.truncf %10 : vector<8x32xf32> to vector<8x32xbf16>
    %c0_7 = arith.constant 0 : index
    %c0_8 = arith.constant 0 : index
    %c0_9 = arith.constant 0 : index
    %12 = vector.load %arg6[%c0_7, %c0_8, %c0_9] : memref<1x32x96xbf16, #tpu.memory_space<vmem>>, vector<1x32x96xbf16>
    %13 = vector.shape_cast %12 : vector<1x32x96xbf16> to vector<32x96xbf16>
    %cst_10 = arith.constant dense<0.000000e+00> : vector<8x96xf32>
    %14 = tpu.matmul %11, %13, %cst_10 {dimension_numbers = #tpu.dot_dimension_numbers<[1], [0], [0], [1], [0, 0, 1, 1], [], []>} : vector<8x32xbf16>, vector<32x96xbf16>, vector<8x96xf32> -> vector<8x96xf32>
    %c0_11 = arith.constant 0 : index
    %c0_12 = arith.constant 0 : index
    %c0_13 = arith.constant 0 : index
    %15 = vector.load %arg7[%c0_11, %c0_12, %c0_13] : memref<1x1x96xf32, #tpu.memory_space<vmem>>, vector<1x1x96xf32>
    %16 = vector.shape_cast %15 : vector<1x1x96xf32> to vector<1x96xf32>
    %17 = vector.broadcast %16 : vector<1x96xf32> to vector<8x96xf32>
    %18 = arith.addf %14, %17 : vector<8x96xf32>
    %19 = vector.extract_strided_slice %18 {offsets = [0, 0], sizes = [8, 32], strides = [1, 1]} : vector<8x96xf32> to vector<8x32xf32>
    %cst_14 = arith.constant 2.500000e-01 : f32
    %20 = vector.broadcast %cst_14 : f32 to vector<8x32xf32>
    %21 = arith.mulf %19, %20 : vector<8x32xf32>
    %22 = vector.extract_strided_slice %18 {offsets = [0, 32], sizes = [8, 32], strides = [1, 1]} : vector<8x96xf32> to vector<8x32xf32>
    %23 = vector.extract_strided_slice %18 {offsets = [0, 64], sizes = [8, 32], strides = [1, 1]} : vector<8x96xf32> to vector<8x32xf32>
    %24 = vector.extract_strided_slice %21 {offsets = [0, 0], sizes = [8, 16], strides = [1, 1]} : vector<8x32xf32> to vector<8x16xf32>
    %25 = arith.truncf %24 : vector<8x16xf32> to vector<8x16xbf16>
    %26 = vector.extract_strided_slice %22 {offsets = [0, 0], sizes = [8, 16], strides = [1, 1]} : vector<8x32xf32> to vector<8x16xf32>
    %27 = arith.truncf %26 : vector<8x16xf32> to vector<8x16xbf16>
    %28 = vector.extract_strided_slice %23 {offsets = [0, 0], sizes = [8, 16], strides = [1, 1]} : vector<8x32xf32> to vector<8x16xf32>
    %29 = arith.truncf %28 : vector<8x16xf32> to vector<8x16xbf16>
    %cst_15 = arith.constant dense<0.000000e+00> : vector<8x8xf32>
    %30 = tpu.matmul %25, %27, %cst_15 {dimension_numbers = #tpu.dot_dimension_numbers<[1], [1], [0], [0], [0, 0, 1, 0], [], []>} : vector<8x16xbf16>, vector<8x16xbf16>, vector<8x8xf32> -> vector<8x8xf32>
    %31 = vector.broadcast %9 : vector<1x8xf32> to vector<8x8xf32>
    %32 = arith.addf %30, %31 : vector<8x8xf32>
    %cst_16 = arith.constant dense<0xFF800000> : vector<8xf32>
    %33 = vector.multi_reduction <maximumf>, %32, %cst_16 [1] : vector<8x8xf32> to vector<8xf32>
    %34 = vector.shape_cast %33 : vector<8xf32> to vector<8x1xf32>
    %35 = vector.broadcast %34 : vector<8x1xf32> to vector<8x8xf32>
    %36 = arith.subf %32, %35 : vector<8x8xf32>
    %37 = math.exp %36 : vector<8x8xf32>
    %cst_17 = arith.constant dense<0.000000e+00> : vector<8xf32>
    %38 = vector.multi_reduction <add>, %37, %cst_17 [1] : vector<8x8xf32> to vector<8xf32>
    %39 = vector.shape_cast %38 : vector<8xf32> to vector<8x1xf32>
    %40 = vector.broadcast %39 : vector<8x1xf32> to vector<8x8xf32>
    %41 = arith.divf %37, %40 : vector<8x8xf32>
    %42 = arith.truncf %41 : vector<8x8xf32> to vector<8x8xbf16>
    %cst_18 = arith.constant dense<0.000000e+00> : vector<8x16xf32>
    %43 = tpu.matmul %42, %29, %cst_18 {dimension_numbers = #tpu.dot_dimension_numbers<[1], [0], [0], [1], [0, 0, 1, 1], [], []>} : vector<8x8xbf16>, vector<8x16xbf16>, vector<8x16xf32> -> vector<8x16xf32>
    %44 = vector.extract_strided_slice %21 {offsets = [0, 16], sizes = [8, 16], strides = [1, 1]} : vector<8x32xf32> to vector<8x16xf32>
    %45 = arith.truncf %44 : vector<8x16xf32> to vector<8x16xbf16>
    %46 = vector.extract_strided_slice %22 {offsets = [0, 16], sizes = [8, 16], strides = [1, 1]} : vector<8x32xf32> to vector<8x16xf32>
    %47 = arith.truncf %46 : vector<8x16xf32> to vector<8x16xbf16>
    %48 = vector.extract_strided_slice %23 {offsets = [0, 16], sizes = [8, 16], strides = [1, 1]} : vector<8x32xf32> to vector<8x16xf32>
    %49 = arith.truncf %48 : vector<8x16xf32> to vector<8x16xbf16>
    %cst_19 = arith.constant dense<0.000000e+00> : vector<8x8xf32>
    %50 = tpu.matmul %45, %47, %cst_19 {dimension_numbers = #tpu.dot_dimension_numbers<[1], [1], [0], [0], [0, 0, 1, 0], [], []>} : vector<8x16xbf16>, vector<8x16xbf16>, vector<8x8xf32> -> vector<8x8xf32>
    %51 = vector.broadcast %9 : vector<1x8xf32> to vector<8x8xf32>
    %52 = arith.addf %50, %51 : vector<8x8xf32>
    %cst_20 = arith.constant dense<0xFF800000> : vector<8xf32>
    %53 = vector.multi_reduction <maximumf>, %52, %cst_20 [1] : vector<8x8xf32> to vector<8xf32>
    %54 = vector.shape_cast %53 : vector<8xf32> to vector<8x1xf32>
    %55 = vector.broadcast %54 : vector<8x1xf32> to vector<8x8xf32>
    %56 = arith.subf %52, %55 : vector<8x8xf32>
    %57 = math.exp %56 : vector<8x8xf32>
    %cst_21 = arith.constant dense<0.000000e+00> : vector<8xf32>
    %58 = vector.multi_reduction <add>, %57, %cst_21 [1] : vector<8x8xf32> to vector<8xf32>
    %59 = vector.shape_cast %58 : vector<8xf32> to vector<8x1xf32>
    %60 = vector.broadcast %59 : vector<8x1xf32> to vector<8x8xf32>
    %61 = arith.divf %57, %60 : vector<8x8xf32>
    %62 = arith.truncf %61 : vector<8x8xf32> to vector<8x8xbf16>
    %cst_22 = arith.constant dense<0.000000e+00> : vector<8x16xf32>
    %63 = tpu.matmul %62, %49, %cst_22 {dimension_numbers = #tpu.dot_dimension_numbers<[1], [0], [0], [1], [0, 0, 1, 1], [], []>} : vector<8x8xbf16>, vector<8x16xbf16>, vector<8x16xf32> -> vector<8x16xf32>
    %64 = tpu.concatenate %43, %63 in 1 : vector<8x16xf32>, vector<8x16xf32> -> vector<8x32xf32>
    %65 = arith.truncf %64 : vector<8x32xf32> to vector<8x32xbf16>
    %c0_23 = arith.constant 0 : index
    %c0_24 = arith.constant 0 : index
    %c0_25 = arith.constant 0 : index
    %66 = vector.load %arg8[%c0_23, %c0_24, %c0_25] : memref<1x32x32xbf16, #tpu.memory_space<vmem>>, vector<1x32x32xbf16>
    %67 = vector.shape_cast %66 : vector<1x32x32xbf16> to vector<32x32xbf16>
    %cst_26 = arith.constant dense<0.000000e+00> : vector<8x32xf32>
    %68 = tpu.matmul %65, %67, %cst_26 {dimension_numbers = #tpu.dot_dimension_numbers<[1], [0], [0], [1], [0, 0, 1, 1], [], []>} : vector<8x32xbf16>, vector<32x32xbf16>, vector<8x32xf32> -> vector<8x32xf32>
    %c0_27 = arith.constant 0 : index
    %c0_28 = arith.constant 0 : index
    %c0_29 = arith.constant 0 : index
    %69 = vector.load %arg9[%c0_27, %c0_28, %c0_29] : memref<1x1x32xf32, #tpu.memory_space<vmem>>, vector<1x1x32xf32>
    %70 = vector.shape_cast %69 : vector<1x1x32xf32> to vector<1x32xf32>
    %71 = vector.broadcast %70 : vector<1x32xf32> to vector<8x32xf32>
    %72 = arith.addf %68, %71 : vector<8x32xf32>
    %73 = arith.addf %10, %72 : vector<8x32xf32>
    %c0_30 = arith.constant 0 : index
    %c0_31 = arith.constant 0 : index
    %c0_32 = arith.constant 0 : index
    %74 = vector.load %arg10[%c0_30, %c0_31, %c0_32] : memref<1x1x32xf32, #tpu.memory_space<vmem>>, vector<1x1x32xf32>
    %75 = vector.shape_cast %74 : vector<1x1x32xf32> to vector<1x32xf32>
    %c0_33 = arith.constant 0 : index
    %c0_34 = arith.constant 0 : index
    %c0_35 = arith.constant 0 : index
    %76 = vector.load %arg11[%c0_33, %c0_34, %c0_35] : memref<1x1x32xf32, #tpu.memory_space<vmem>>, vector<1x1x32xf32>
    %77 = vector.shape_cast %76 : vector<1x1x32xf32> to vector<1x32xf32>
    %cst_36 = arith.constant dense<0.000000e+00> : vector<8xf32>
    %78 = vector.multi_reduction <add>, %73, %cst_36 [1] : vector<8x32xf32> to vector<8xf32>
    %79 = vector.shape_cast %78 : vector<8xf32> to vector<8x1xf32>
    %cst_37 = arith.constant 3.200000e+01 : f32
    %80 = vector.broadcast %cst_37 : f32 to vector<8x1xf32>
    %81 = arith.divf %79, %80 : vector<8x1xf32>
    %82 = vector.broadcast %81 : vector<8x1xf32> to vector<8x32xf32>
    %83 = arith.subf %73, %82 : vector<8x32xf32>
    %84 = arith.mulf %83, %83 : vector<8x32xf32>
    %cst_38 = arith.constant dense<0.000000e+00> : vector<8xf32>
    %85 = vector.multi_reduction <add>, %84, %cst_38 [1] : vector<8x32xf32> to vector<8xf32>
    %86 = vector.shape_cast %85 : vector<8xf32> to vector<8x1xf32>
    %cst_39 = arith.constant 3.200000e+01 : f32
    %87 = vector.broadcast %cst_39 : f32 to vector<8x1xf32>
    %88 = arith.divf %86, %87 : vector<8x1xf32>
    %89 = vector.broadcast %81 : vector<8x1xf32> to vector<8x32xf32>
    %90 = arith.subf %73, %89 : vector<8x32xf32>
    %cst_40 = arith.constant 9.99999996E-13 : f32
    %91 = vector.broadcast %cst_40 : f32 to vector<8x1xf32>
    %92 = arith.addf %88, %91 : vector<8x1xf32>
    %93 = math.rsqrt %92 : vector<8x1xf32>
    %94 = vector.broadcast %93 : vector<8x1xf32> to vector<8x32xf32>
    %95 = arith.mulf %90, %94 : vector<8x32xf32>
    %96 = vector.broadcast %75 : vector<1x32xf32> to vector<8x32xf32>
    %97 = arith.mulf %95, %96 : vector<8x32xf32>
    %98 = vector.broadcast %77 : vector<1x32xf32> to vector<8x32xf32>
    %99 = arith.addf %97, %98 : vector<8x32xf32>
    %100 = arith.truncf %99 : vector<8x32xf32> to vector<8x32xbf16>
    %c0_41 = arith.constant 0 : index
    %c0_42 = arith.constant 0 : index
    %c0_43 = arith.constant 0 : index
    %101 = vector.load %arg12[%c0_41, %c0_42, %c0_43] : memref<1x32x64xbf16, #tpu.memory_space<vmem>>, vector<1x32x64xbf16>
    %102 = vector.shape_cast %101 : vector<1x32x64xbf16> to vector<32x64xbf16>
    %cst_44 = arith.constant dense<0.000000e+00> : vector<8x64xf32>
    %103 = tpu.matmul %100, %102, %cst_44 {dimension_numbers = #tpu.dot_dimension_numbers<[1], [0], [0], [1], [0, 0, 1, 1], [], []>} : vector<8x32xbf16>, vector<32x64xbf16>, vector<8x64xf32> -> vector<8x64xf32>
    %c0_45 = arith.constant 0 : index
    %c0_46 = arith.constant 0 : index
    %c0_47 = arith.constant 0 : index
    %104 = vector.load %arg13[%c0_45, %c0_46, %c0_47] : memref<1x1x64xf32, #tpu.memory_space<vmem>>, vector<1x1x64xf32>
    %105 = vector.shape_cast %104 : vector<1x1x64xf32> to vector<1x64xf32>
    %106 = vector.broadcast %105 : vector<1x64xf32> to vector<8x64xf32>
    %107 = arith.addf %103, %106 : vector<8x64xf32>
    %cst_48 = arith.constant 0.707106769 : f32
    %108 = vector.broadcast %cst_48 : f32 to vector<8x64xf32>
    %109 = arith.mulf %107, %108 : vector<8x64xf32>
    %110 = math.absf %109 : vector<8x64xf32>
    %cst_49 = arith.constant 0.327591091 : f32
    %111 = vector.broadcast %cst_49 : f32 to vector<8x64xf32>
    %112 = arith.mulf %111, %110 : vector<8x64xf32>
    %cst_50 = arith.constant 1.000000e+00 : f32
    %113 = vector.broadcast %cst_50 : f32 to vector<8x64xf32>
    %114 = arith.addf %113, %112 : vector<8x64xf32>
    %cst_51 = arith.constant 1.000000e+00 : f32
    %115 = vector.broadcast %cst_51 : f32 to vector<8x64xf32>
    %116 = arith.divf %115, %114 : vector<8x64xf32>
    %cst_52 = arith.constant 1.06140542 : f32
    %117 = vector.broadcast %cst_52 : f32 to vector<8x64xf32>
    %118 = arith.mulf %117, %116 : vector<8x64xf32>
    %cst_53 = arith.constant 1.45315206 : f32
    %119 = vector.broadcast %cst_53 : f32 to vector<8x64xf32>
    %120 = arith.subf %118, %119 : vector<8x64xf32>
    %121 = arith.mulf %120, %116 : vector<8x64xf32>
    %cst_54 = arith.constant 1.42141378 : f32
    %122 = vector.broadcast %cst_54 : f32 to vector<8x64xf32>
    %123 = arith.addf %121, %122 : vector<8x64xf32>
    %124 = arith.mulf %123, %116 : vector<8x64xf32>
    %cst_55 = arith.constant 0.284496725 : f32
    %125 = vector.broadcast %cst_55 : f32 to vector<8x64xf32>
    %126 = arith.subf %124, %125 : vector<8x64xf32>
    %127 = arith.mulf %126, %116 : vector<8x64xf32>
    %cst_56 = arith.constant 0.254829586 : f32
    %128 = vector.broadcast %cst_56 : f32 to vector<8x64xf32>
    %129 = arith.addf %127, %128 : vector<8x64xf32>
    %130 = arith.mulf %129, %116 : vector<8x64xf32>
    %cst_57 = arith.constant 0.000000e+00 : f32
    %131 = vector.broadcast %cst_57 : f32 to vector<8x64xf32>
    %132 = arith.subf %131, %110 : vector<8x64xf32>
    %133 = arith.mulf %132, %110 : vector<8x64xf32>
    %134 = math.exp %133 : vector<8x64xf32>
    %135 = arith.mulf %130, %134 : vector<8x64xf32>
    %cst_58 = arith.constant 1.000000e+00 : f32
    %136 = vector.broadcast %cst_58 : f32 to vector<8x64xf32>
    %137 = arith.subf %136, %135 : vector<8x64xf32>
    %cst_59 = arith.constant 0.000000e+00 : f32
    %138 = vector.broadcast %cst_59 : f32 to vector<8x64xf32>
    %139 = arith.cmpf oge, %109, %138 : vector<8x64xf32>
    %cst_60 = arith.constant 0.000000e+00 : f32
    %140 = vector.broadcast %cst_60 : f32 to vector<8x64xf32>
    %141 = arith.subf %140, %137 : vector<8x64xf32>
    %142 = arith.select %139, %137, %141 : vector<8x64xi1>, vector<8x64xf32>
    %cst_61 = arith.constant 5.000000e-01 : f32
    %143 = vector.broadcast %cst_61 : f32 to vector<8x64xf32>
    %144 = arith.mulf %143, %107 : vector<8x64xf32>
    %cst_62 = arith.constant 1.000000e+00 : f32
    %145 = vector.broadcast %cst_62 : f32 to vector<8x64xf32>
    %146 = arith.addf %145, %142 : vector<8x64xf32>
    %147 = arith.mulf %144, %146 : vector<8x64xf32>
    %148 = arith.truncf %147 : vector<8x64xf32> to vector<8x64xbf16>
    %c0_63 = arith.constant 0 : index
    %c0_64 = arith.constant 0 : index
    %c0_65 = arith.constant 0 : index
    %149 = vector.load %arg14[%c0_63, %c0_64, %c0_65] : memref<1x64x32xbf16, #tpu.memory_space<vmem>>, vector<1x64x32xbf16>
    %150 = vector.shape_cast %149 : vector<1x64x32xbf16> to vector<64x32xbf16>
    %cst_66 = arith.constant dense<0.000000e+00> : vector<8x32xf32>
    %151 = tpu.matmul %148, %150, %cst_66 {dimension_numbers = #tpu.dot_dimension_numbers<[1], [0], [0], [1], [0, 0, 1, 1], [], []>} : vector<8x64xbf16>, vector<64x32xbf16>, vector<8x32xf32> -> vector<8x32xf32>
    %c0_67 = arith.constant 0 : index
    %c0_68 = arith.constant 0 : index
    %c0_69 = arith.constant 0 : index
    %152 = vector.load %arg15[%c0_67, %c0_68, %c0_69] : memref<1x1x32xf32, #tpu.memory_space<vmem>>, vector<1x1x32xf32>
    %153 = vector.shape_cast %152 : vector<1x1x32xf32> to vector<1x32xf32>
    %154 = vector.broadcast %153 : vector<1x32xf32> to vector<8x32xf32>
    %155 = arith.addf %151, %154 : vector<8x32xf32>
    %156 = arith.addf %99, %155 : vector<8x32xf32>
    %c0_70 = arith.constant 0 : index
    %c0_71 = arith.constant 0 : index
    %c0_72 = arith.constant 0 : index
    %157 = vector.load %arg16[%c0_70, %c0_71, %c0_72] : memref<1x1x32xf32, #tpu.memory_space<vmem>>, vector<1x1x32xf32>
    %158 = vector.shape_cast %157 : vector<1x1x32xf32> to vector<1x32xf32>
    %c0_73 = arith.constant 0 : index
    %c0_74 = arith.constant 0 : index
    %c0_75 = arith.constant 0 : index
    %159 = vector.load %arg17[%c0_73, %c0_74, %c0_75] : memref<1x1x32xf32, #tpu.memory_space<vmem>>, vector<1x1x32xf32>
    %160 = vector.shape_cast %159 : vector<1x1x32xf32> to vector<1x32xf32>
    %cst_76 = arith.constant dense<0.000000e+00> : vector<8xf32>
    %161 = vector.multi_reduction <add>, %156, %cst_76 [1] : vector<8x32xf32> to vector<8xf32>
    %162 = vector.shape_cast %161 : vector<8xf32> to vector<8x1xf32>
    %cst_77 = arith.constant 3.200000e+01 : f32
    %163 = vector.broadcast %cst_77 : f32 to vector<8x1xf32>
    %164 = arith.divf %162, %163 : vector<8x1xf32>
    %165 = vector.broadcast %164 : vector<8x1xf32> to vector<8x32xf32>
    %166 = arith.subf %156, %165 : vector<8x32xf32>
    %167 = arith.mulf %166, %166 : vector<8x32xf32>
    %cst_78 = arith.constant dense<0.000000e+00> : vector<8xf32>
    %168 = vector.multi_reduction <add>, %167, %cst_78 [1] : vector<8x32xf32> to vector<8xf32>
    %169 = vector.shape_cast %168 : vector<8xf32> to vector<8x1xf32>
    %cst_79 = arith.constant 3.200000e+01 : f32
    %170 = vector.broadcast %cst_79 : f32 to vector<8x1xf32>
    %171 = arith.divf %169, %170 : vector<8x1xf32>
    %172 = vector.broadcast %164 : vector<8x1xf32> to vector<8x32xf32>
    %173 = arith.subf %156, %172 : vector<8x32xf32>
    %cst_80 = arith.constant 9.99999996E-13 : f32
    %174 = vector.broadcast %cst_80 : f32 to vector<8x1xf32>
    %175 = arith.addf %171, %174 : vector<8x1xf32>
    %176 = math.rsqrt %175 : vector<8x1xf32>
    %177 = vector.broadcast %176 : vector<8x1xf32> to vector<8x32xf32>
    %178 = arith.mulf %173, %177 : vector<8x32xf32>
    %179 = vector.broadcast %158 : vector<1x32xf32> to vector<8x32xf32>
    %180 = arith.mulf %178, %179 : vector<8x32xf32>
    %181 = vector.broadcast %160 : vector<1x32xf32> to vector<8x32xf32>
    %182 = arith.addf %180, %181 : vector<8x32xf32>
    %c0_81 = arith.constant 0 : index
    %c0_82 = arith.constant 0 : index
    %183 = vector.load %arg18[%c0_81, %c0_82] : memref<8x32xf32, #tpu.memory_space<vmem>>, vector<8x32xf32>
    tpu.vector_store %arg18[%c0_81, %c0_82], %182 {strides = array<i32>} : memref<8x32xf32, #tpu.memory_space<vmem>>, vector<8x32xf32>,
    return
  }
  func.func @transform_0(%arg0: i32, %arg1: i32) -> (i32, i32) {
    %c0_i32 = arith.constant 0 : i32
    %c0_i32_0 = arith.constant 0 : i32
    return %arg0, %c0_i32 : i32, i32
  }
  func.func @transform_1(%arg0: i32, %arg1: i32) -> (i32, i32, i32) {
    %c0_i32 = arith.constant 0 : i32
    %c0_i32_0 = arith.constant 0 : i32
    %c0_i32_1 = arith.constant 0 : i32
    return %arg0, %c0_i32, %c0_i32_0 : i32, i32, i32
  }
  func.func @transform_2(%arg0: i32, %arg1: i32) -> (i32, i32) {
    %c0_i32 = arith.constant 0 : i32
    %c0_i32_0 = arith.constant 0 : i32
    %c0_i32_1 = arith.constant 0 : i32
    return %c0_i32, %c0_i32_0 : i32, i32
  }
  func.func @transform_3(%arg0: i32, %arg1: i32) -> (i32, i32) {
    %c0_i32 = arith.constant 0 : i32
    %c0_i32_0 = arith.constant 0 : i32
    %c0_i32_1 = arith.constant 0 : i32
    return %c0_i32, %c0_i32_0 : i32, i32
  }
  func.func @transform_4(%arg0: i32, %arg1: i32) -> (i32, i32, i32) {
    %c0_i32 = arith.constant 0 : i32
    %c0_i32_0 = arith.constant 0 : i32
    %c0_i32_1 = arith.constant 0 : i32
    return %arg1, %c0_i32, %c0_i32_0 : i32, i32, i32
  }
  func.func @transform_5(%arg0: i32, %arg1: i32) -> (i32, i32, i32) {
    %c0_i32 = arith.constant 0 : i32
    %c0_i32_0 = arith.constant 0 : i32
    %c0_i32_1 = arith.constant 0 : i32
    return %arg1, %c0_i32, %c0_i32_0 : i32, i32, i32
  }
  func.func @transform_6(%arg0: i32, %arg1: i32) -> (i32, i32, i32) {
    %c0_i32 = arith.constant 0 : i32
    %c0_i32_0 = arith.constant 0 : i32
    %c0_i32_1 = arith.constant 0 : i32
    return %arg1, %c0_i32, %c0_i32_0 : i32, i32, i32
  }
  func.func @transform_7(%arg0: i32, %arg1: i32) -> (i32, i32, i32) {
    %c0_i32 = arith.constant 0 : i32
    %c0_i32_0 = arith.constant 0 : i32
    %c0_i32_1 = arith.constant 0 : i32
    return %arg1, %c0_i32, %c0_i32_0 : i32, i32, i32
  }
  func.func @transform_8(%arg0: i32, %arg1: i32) -> (i32, i32, i32) {
    %c0_i32 = arith.constant 0 : i32
    %c0_i32_0 = arith.constant 0 : i32
    %c0_i32_1 = arith.constant 0 : i32
    return %arg1, %c0_i32, %c0_i32_0 : i32, i32, i32
  }
  func.func @transform_9(%arg0: i32, %arg1: i32) -> (i32, i32, i32) {
    %c0_i32 = arith.constant 0 : i32
    %c0_i32_0 = arith.constant 0 : i32
    %c0_i32_1 = arith.constant 0 : i32
    return %arg1, %c0_i32, %c0_i32_0 : i32, i32, i32
  }
  func.func @transform_10(%arg0: i32, %arg1: i32) -> (i32, i32, i32) {
    %c0_i32 = arith.constant 0 : i32
    %c0_i32_0 = arith.constant 0 : i32
    %c0_i32_1 = arith.constant 0 : i32
    return %arg1, %c0_i32, %c0_i32_0 : i32, i32, i32
  }
  func.func @transform_11(%arg0: i32, %arg1: i32) -> (i32, i32, i32) {
    %c0_i32 = arith.constant 0 : i32
    %c0_i32_0 = arith.constant 0 : i32
    %c0_i32_1 = arith.constant 0 : i32
    return %arg1, %c0_i32, %c0_i32_0 : i32, i32, i32
  }
  func.func @transform_12(%arg0: i32, %arg1: i32) -> (i32, i32, i32) {
    %c0_i32 = arith.constant 0 : i32
    %c0_i32_0 = arith.constant 0 : i32
    %c0_i32_1 = arith.constant 0 : i32
    return %arg1, %c0_i32, %c0_i32_0 : i32, i32, i32
  }
  func.func @transform_13(%arg0: i32, %arg1: i32) -> (i32, i32, i32) {
    %c0_i32 = arith.constant 0 : i32
    %c0_i32_0 = arith.constant 0 : i32
    %c0_i32_1 = arith.constant 0 : i32
    return %arg1, %c0_i32, %c0_i32_0 : i32, i32, i32
  }
  func.func @transform_14(%arg0: i32, %arg1: i32) -> (i32, i32, i32) {
    %c0_i32 = arith.constant 0 : i32
    %c0_i32_0 = arith.constant 0 : i32
    %c0_i32_1 = arith.constant 0 : i32
    return %arg1, %c0_i32, %c0_i32_0 : i32, i32, i32
  }
  func.func @transform_15(%arg0: i32, %arg1: i32) -> (i32, i32, i32) {
    %c0_i32 = arith.constant 0 : i32
    %c0_i32_0 = arith.constant 0 : i32
    %c0_i32_1 = arith.constant 0 : i32
    return %arg1, %c0_i32, %c0_i32_0 : i32, i32, i32
  }
  func.func @transform_16(%arg0: i32, %arg1: i32) -> (i32, i32) {
    %c0_i32 = arith.constant 0 : i32
    %c0_i32_0 = arith.constant 0 : i32
    return %arg0, %c0_i32 : i32, i32
  }
}

</mosaic_0001>

<llo_original>
// kernel: tpu_custom_call.1
$region0: #{tpu_custom_call.1}
  #allocation0 [shape = 'u32[]', space=smem, size = 0x4, offset = 0x4, fixed_abs, tag = 'smem constant byte address 0x4 - core index']
  #allocation1 [shape = 'u32[144,128]{1,0:T(1,128)}', space=vmem, size = 0x12000, scoped, tag = 'internal scratch']
  %s0 = inlined_call_operand.hbm [shape: f32[16,32], index: 0, kind: input, shape index: {}]
  %s1 = inlined_call_operand.vmem [shape: f32[2,1,8], index: 1, kind: input, shape index: {}]
  %s2 = inlined_call_operand.vmem [shape: f32[1,32], index: 2, kind: input, shape index: {}]
  %s3 = inlined_call_operand.hbm [shape: f32[1,32], index: 3, kind: input, shape index: {}]
  %s4 = inlined_call_operand.vmem [shape: bf16[2,32,96], index: 4, kind: input, shape index: {}]
  %s5 = inlined_call_operand.vmem [shape: f32[2,1,96], index: 5, kind: input, shape index: {}]
  %s6 = inlined_call_operand.vmem [shape: bf16[2,32,32], index: 6, kind: input, shape index: {}]
  %s7 = inlined_call_operand.vmem [shape: f32[2,1,32], index: 7, kind: input, shape index: {}]
  %s8 = inlined_call_operand.vmem [shape: f32[2,1,32], index: 8, kind: input, shape index: {}]
  %s9 = inlined_call_operand.vmem [shape: f32[2,1,32], index: 9, kind: input, shape index: {}]
  %s10 = inlined_call_operand.vmem [shape: bf16[2,32,64], index: 10, kind: input, shape index: {}]
  %s11 = inlined_call_operand.vmem [shape: f32[2,1,64], index: 11, kind: input, shape index: {}]
  %s12 = inlined_call_operand.vmem [shape: bf16[2,64,32], index: 12, kind: input, shape index: {}]
  %s13 = inlined_call_operand.vmem [shape: f32[2,1,32], index: 13, kind: input, shape index: {}]
  %s14 = inlined_call_operand.vmem [shape: f32[2,1,32], index: 14, kind: input, shape index: {}]
  %s15 = inlined_call_operand.vmem [shape: f32[2,1,32], index: 15, kind: input, shape index: {}]
  %s16 = inlined_call_operand.hbm [shape: f32[16,32], index: 16, kind: output, shape index: {}]
  %s17 = sld [smem:[#allocation0]]
  $region109: #{tpu_custom_call.1} parent=0
    _
  %s19 = ssub.s32 1, %s17
  %s20 = scalar_select 0, %s19, %s17
  $region1: #{tpu_custom_call.1} parent=0
    #allocation2 [shape = 'u8[8192]{0}', space=vmem, size = 0x2000, scoped, tag = 'input window, operand 0']
    #allocation3 [shape = 's32[2]{0}', space=sflag, size = 0x8, scoped, tag = 'scoped memory for tpu_custom_call.1']
    #allocation4 [shape = 's32[2]{0}', space=sflag, size = 0x8, scoped, tag = 'scoped memory for tpu_custom_call.1']
    #allocation5 [shape = 'u8[512]{0}', space=vmem, size = 0x400, scoped, tag = 'input window, operand 3, single buffered']
    #allocation6 [shape = 's32[1]{0}', space=sflag, size = 0x4, scoped, tag = 'scoped memory for tpu_custom_call.1']
    #allocation7 [shape = 'u8[8192]{0}', space=vmem, size = 0x2000, scoped, tag = 'output window, operand 0']
    %21 = vsyncpa [#allocation3], 0
    %s22 = scalar_lea.sflag [#allocation3], 1
    %23 = vsyncpa %s22, 0
    %24 = vsyncpa [#allocation6], 0
    %25 = vsyncpa [#allocation4], 0
    %s26 = scalar_lea.sflag [#allocation4], 1
    %27 = vsyncpa %s26, 0
    loop: start=0, step=1, limit=6
    $region2: #{tpu_custom_call.1} parent=1 // loop_pre_header
      _
    $region3: #{tpu_custom_call.1} parent=1 // loop_header
      %s29 = sphi 0, %s33
      %p30 = scmp.ge.s32.totalorder %s29, 6
      %s36 = sphi 0, %s48
      %s37 = sphi 0, %s44
      %s38 = sphi 0, %s36
      %s39 = sphi 0, %s37
      %s40 = sphi 0, %s38
      %s41 = sphi 0, %s39
      %s51 = sphi 0, %s53
      %s54 = sphi 0, %s51
      %s55 = sphi 0, %s54
      %s71 = sphi 0, %s55
      %s77 = sphi 0, %s79
      %s80 = sphi 0, %s77
      %s81 = sphi 0, %s80
      %s97 = sphi 0, %s81
      %s101 = sphi 0, %s101
      %s103 = sphi 0, %s101
      %s104 = sphi 0, %s103
      %s118 = sphi 0, %s104
      %s122 = sphi 0, %s122
      %s124 = sphi 0, %s122
      %s125 = sphi 0, %s124
      %s139 = sphi 0, %s125
      %s145 = sphi 0, %s147
      %s148 = sphi 0, %s145
      %s149 = sphi 0, %s148
      %s165 = sphi 0, %s149
      %s171 = sphi 0, %s173
      %s174 = sphi 0, %s171
      %s175 = sphi 0, %s174
      %s191 = sphi 0, %s175
      %s197 = sphi 0, %s199
      %s200 = sphi 0, %s197
      %s201 = sphi 0, %s200
      %s217 = sphi 0, %s201
      %s223 = sphi 0, %s225
      %s226 = sphi 0, %s223
      %s227 = sphi 0, %s226
      %s243 = sphi 0, %s227
      %s249 = sphi 0, %s251
      %s252 = sphi 0, %s249
      %s253 = sphi 0, %s252
      %s269 = sphi 0, %s253
      %s275 = sphi 0, %s277
      %s278 = sphi 0, %s275
      %s279 = sphi 0, %s278
      %s295 = sphi 0, %s279
      %s301 = sphi 0, %s303
      %s304 = sphi 0, %s301
      %s305 = sphi 0, %s304
      %s321 = sphi 0, %s305
      %s327 = sphi 0, %s329
      %s330 = sphi 0, %s327
      %s331 = sphi 0, %s330
      %s347 = sphi 0, %s331
      %s353 = sphi 0, %s355
      %s356 = sphi 0, %s353
      %s357 = sphi 0, %s356
      %s373 = sphi 0, %s357
      %s379 = sphi 0, %s381
      %s382 = sphi 0, %s379
      %s383 = sphi 0, %s382
      %s399 = sphi 0, %s383
      %s405 = sphi 0, %s407
      %s408 = sphi 0, %s405
      %s409 = sphi 0, %s408
      %s425 = sphi 0, %s409
      %s431 = sphi 0, %s433
      %s434 = sphi 0, %s431
      %s435 = sphi 0, %s434
      %s451 = sphi 0, %s435
      %s457 = sphi 0, %s459
      %s460 = sphi 0, %s457
      %s461 = sphi 0, %s460
      %s477 = sphi 0, %s461
    $region4: #{tpu_custom_call.1} parent=1 // loop_header_branch
      %32 = sbr.rel (%p30) target = $region8
    $region5: #{tpu_custom_call.1} parent=1 // loop_body
      %s34 = ssub.s32 %s29, 1
      %s35 = ssub.s32 %s29, 2
      %s42 = sadd.s32 1, %s37
      %p43 = scmp.ge.s32.totalorder %s42, 2
      %s44 = scalar_select %p43, 0, %s42
      %s45 = sadd.s32 1, %s36
      %s46 = scalar_select %p43, %s45, %s36
      %p47 = scmp.ge.s32.totalorder %s46, 2
      %s48 = scalar_select %p47, 0, %s46
      %s49 = ssub.s32 %s36, %s48
      %p50 = scmp.eq.s32.totalorder %s49, 0
      %s52 = sadd.s32 %s51, 1
      %s53 = scalar_select %p50, %s51, %s52
      %p56 = pneg %p50
      %p57 = scmp.eq.s32.totalorder %s29, 3
      %p58 = por %p56, %p57
      %p59 = scmp.ne.s32.totalorder %s51, %s54
      %p60 = scmp.eq.s32.totalorder %s29, 0
      %p61 = por %p59, %p60
      %p62 = scmp.ne.s32.totalorder %s51, %s54
      %p63 = scmp.eq.s32.totalorder %s34, 3
      %p64 = por %p62, %p63
      %p65 = scmp.ne.s32.totalorder %s54, %s55
      %p66 = scmp.eq.s32.totalorder %s34, 0
      %p67 = por %p65, %p66
      %p68 = scmp.ne.s32.totalorder %s54, %s55
      %p69 = scmp.eq.s32.totalorder %s35, 3
      %p70 = por %p68, %p69
      %p72 = scmp.ne.s32.totalorder %s55, %s71
      %p73 = scmp.eq.s32.totalorder %s35, 0
      %p74 = por %p72, %p73
      %s75 = ssub.s32 %s36, %s48
      %p76 = scmp.eq.s32.totalorder %s75, 0
      %s78 = sadd.s32 %s77, 1
      %s79 = scalar_select %p76, %s77, %s78
      %p82 = pneg %p76
      %p83 = scmp.eq.s32.totalorder %s29, 3
      %p84 = por %p82, %p83
      %p85 = scmp.ne.s32.totalorder %s77, %s80
      %p86 = scmp.eq.s32.totalorder %s29, 0
      %p87 = por %p85, %p86
      %p88 = scmp.ne.s32.totalorder %s77, %s80
      %p89 = scmp.eq.s32.totalorder %s34, 3
      %p90 = por %p88, %p89
      %p91 = scmp.ne.s32.totalorder %s80, %s81
      %p92 = scmp.eq.s32.totalorder %s34, 0
      %p93 = por %p91, %p92
      %p94 = scmp.ne.s32.totalorder %s80, %s81
      %p95 = scmp.eq.s32.totalorder %s35, 3
      %p96 = por %p94, %p95
      %p98 = scmp.ne.s32.totalorder %s81, %s97
      %p99 = scmp.eq.s32.totalorder %s35, 0
      %p100 = por %p98, %p99
      %s102 = sadd.s32 %s101, 1
      %p105 = scmp.eq.s32.totalorder %s29, 3
      %p106 = scmp.ne.s32.totalorder %s101, %s103
      %p107 = scmp.eq.s32.totalorder %s29, 0
      %p108 = por %p106, %p107
      %p109 = scmp.ne.s32.totalorder %s101, %s103
      %p110 = scmp.eq.s32.totalorder %s34, 3
      %p111 = por %p109, %p110
      %p112 = scmp.ne.s32.totalorder %s103, %s104
      %p113 = scmp.eq.s32.totalorder %s34, 0
      %p114 = por %p112, %p113
      %p115 = scmp.ne.s32.totalorder %s103, %s104
      %p116 = scmp.eq.s32.totalorder %s35, 3
      %p117 = por %p115, %p116
      %p119 = scmp.ne.s32.totalorder %s104, %s118
      %p120 = scmp.eq.s32.totalorder %s35, 0
      %p121 = por %p119, %p120
      %s123 = sadd.s32 %s122, 1
      %p126 = scmp.eq.s32.totalorder %s29, 3
      %p127 = scmp.ne.s32.totalorder %s122, %s124
      %p128 = scmp.eq.s32.totalorder %s29, 0
      %p129 = por %p127, %p128
      %p130 = scmp.ne.s32.totalorder %s122, %s124
      %p131 = scmp.eq.s32.totalorder %s34, 3
      %p132 = por %p130, %p131
      %p133 = scmp.ne.s32.totalorder %s124, %s125
      %p134 = scmp.eq.s32.totalorder %s34, 0
      %p135 = por %p133, %p134
      %p136 = scmp.ne.s32.totalorder %s124, %s125
      %p137 = scmp.eq.s32.totalorder %s35, 3
      %p138 = por %p136, %p137
      %p140 = scmp.ne.s32.totalorder %s125, %s139
      %p141 = scmp.eq.s32.totalorder %s35, 0
      %p142 = por %p140, %p141
      %s143 = ssub.s32 %s37, %s44
      %p144 = scmp.eq.s32.totalorder %s143, 0
      %s146 = sadd.s32 %s145, 1
      %s147 = scalar_select %p144, %s145, %s146
      %p150 = pneg %p144
      %p151 = scmp.eq.s32.totalorder %s29, 3
      %p152 = por %p150, %p151
      %p153 = scmp.ne.s32.totalorder %s145, %s148
      %p154 = scmp.eq.s32.totalorder %s29, 0
      %p155 = por %p153, %p154
      %p156 = scmp.ne.s32.totalorder %s145, %s148
      %p157 = scmp.eq.s32.totalorder %s34, 3
      %p158 = por %p156, %p157
      %p159 = scmp.ne.s32.totalorder %s148, %s149
      %p160 = scmp.eq.s32.totalorder %s34, 0
      %p161 = por %p159, %p160
      %p162 = scmp.ne.s32.totalorder %s148, %s149
      %p163 = scmp.eq.s32.totalorder %s35, 3
      %p164 = por %p162, %p163
      %p166 = scmp.ne.s32.totalorder %s149, %s165
      %p167 = scmp.eq.s32.totalorder %s35, 0
      %p168 = por %p166, %p167
      %s169 = ssub.s32 %s37, %s44
      %p170 = scmp.eq.s32.totalorder %s169, 0
      %s172 = sadd.s32 %s171, 1
      %s173 = scalar_select %p170, %s171, %s172
      %p176 = pneg %p170
      %p177 = scmp.eq.s32.totalorder %s29, 3
      %p178 = por %p176, %p177
      %p179 = scmp.ne.s32.totalorder %s171, %s174
      %p180 = scmp.eq.s32.totalorder %s29, 0
      %p181 = por %p179, %p180
      %p182 = scmp.ne.s32.totalorder %s171, %s174
      %p183 = scmp.eq.s32.totalorder %s34, 3
      %p184 = por %p182, %p183
      %p185 = scmp.ne.s32.totalorder %s174, %s175
      %p186 = scmp.eq.s32.totalorder %s34, 0
      %p187 = por %p185, %p186
      %p188 = scmp.ne.s32.totalorder %s174, %s175
      %p189 = scmp.eq.s32.totalorder %s35, 3
      %p190 = por %p188, %p189
      %p192 = scmp.ne.s32.totalorder %s175, %s191
      %p193 = scmp.eq.s32.totalorder %s35, 0
      %p194 = por %p192, %p193
      %s195 = ssub.s32 %s37, %s44
      %p196 = scmp.eq.s32.totalorder %s195, 0
      %s198 = sadd.s32 %s197, 1
      %s199 = scalar_select %p196, %s197, %s198
      %p202 = pneg %p196
      %p203 = scmp.eq.s32.totalorder %s29, 3
      %p204 = por %p202, %p203
      %p205 = scmp.ne.s32.totalorder %s197, %s200
      %p206 = scmp.eq.s32.totalorder %s29, 0
      %p207 = por %p205, %p206
      %p208 = scmp.ne.s32.totalorder %s197, %s200
      %p209 = scmp.eq.s32.totalorder %s34, 3
      %p210 = por %p208, %p209
      %p211 = scmp.ne.s32.totalorder %s200, %s201
      %p212 = scmp.eq.s32.totalorder %s34, 0
      %p213 = por %p211, %p212
      %p214 = scmp.ne.s32.totalorder %s200, %s201
      %p215 = scmp.eq.s32.totalorder %s35, 3
      %p216 = por %p214, %p215
      %p218 = scmp.ne.s32.totalorder %s201, %s217
      %p219 = scmp.eq.s32.totalorder %s35, 0
      %p220 = por %p218, %p219
      %s221 = ssub.s32 %s37, %s44
      %p222 = scmp.eq.s32.totalorder %s221, 0
      %s224 = sadd.s32 %s223, 1
      %s225 = scalar_select %p222, %s223, %s224
      %p228 = pneg %p222
      %p229 = scmp.eq.s32.totalorder %s29, 3
      %p230 = por %p228, %p229
      %p231 = scmp.ne.s32.totalorder %s223, %s226
      %p232 = scmp.eq.s32.totalorder %s29, 0
      %p233 = por %p231, %p232
      %p234 = scmp.ne.s32.totalorder %s223, %s226
      %p235 = scmp.eq.s32.totalorder %s34, 3
      %p236 = por %p234, %p235
      %p237 = scmp.ne.s32.totalorder %s226, %s227
      %p238 = scmp.eq.s32.totalorder %s34, 0
      %p239 = por %p237, %p238
      %p240 = scmp.ne.s32.totalorder %s226, %s227
      %p241 = scmp.eq.s32.totalorder %s35, 3
      %p242 = por %p240, %p241
      %p244 = scmp.ne.s32.totalorder %s227, %s243
      %p245 = scmp.eq.s32.totalorder %s35, 0
      %p246 = por %p244, %p245
      %s247 = ssub.s32 %s37, %s44
      %p248 = scmp.eq.s32.totalorder %s247, 0
      %s250 = sadd.s32 %s249, 1
      %s251 = scalar_select %p248, %s249, %s250
      %p254 = pneg %p248
      %p255 = scmp.eq.s32.totalorder %s29, 3
      %p256 = por %p254, %p255
      %p257 = scmp.ne.s32.totalorder %s249, %s252
      %p258 = scmp.eq.s32.totalorder %s29, 0
      %p259 = por %p257, %p258
      %p260 = scmp.ne.s32.totalorder %s249, %s252
      %p261 = scmp.eq.s32.totalorder %s34, 3
      %p262 = por %p260, %p261
      %p263 = scmp.ne.s32.totalorder %s252, %s253
      %p264 = scmp.eq.s32.totalorder %s34, 0
      %p265 = por %p263, %p264
      %p266 = scmp.ne.s32.totalorder %s252, %s253
      %p267 = scmp.eq.s32.totalorder %s35, 3
      %p268 = por %p266, %p267
      %p270 = scmp.ne.s32.totalorder %s253, %s269
      %p271 = scmp.eq.s32.totalorder %s35, 0
      %p272 = por %p270, %p271
      %s273 = ssub.s32 %s37, %s44
      %p274 = scmp.eq.s32.totalorder %s273, 0
      %s276 = sadd.s32 %s275, 1
      %s277 = scalar_select %p274, %s275, %s276
      %p280 = pneg %p274
      %p281 = scmp.eq.s32.totalorder %s29, 3
      %p282 = por %p280, %p281
      %p283 = scmp.ne.s32.totalorder %s275, %s278
      %p284 = scmp.eq.s32.totalorder %s29, 0
      %p285 = por %p283, %p284
      %p286 = scmp.ne.s32.totalorder %s275, %s278
      %p287 = scmp.eq.s32.totalorder %s34, 3
      %p288 = por %p286, %p287
      %p289 = scmp.ne.s32.totalorder %s278, %s279
      %p290 = scmp.eq.s32.totalorder %s34, 0
      %p291 = por %p289, %p290
      %p292 = scmp.ne.s32.totalorder %s278, %s279
      %p293 = scmp.eq.s32.totalorder %s35, 3
      %p294 = por %p292, %p293
      %p296 = scmp.ne.s32.totalorder %s279, %s295
      %p297 = scmp.eq.s32.totalorder %s35, 0
      %p298 = por %p296, %p297
      %s299 = ssub.s32 %s37, %s44
      %p300 = scmp.eq.s32.totalorder %s299, 0
      %s302 = sadd.s32 %s301, 1
      %s303 = scalar_select %p300, %s301, %s302
      %p306 = pneg %p300
      %p307 = scmp.eq.s32.totalorder %s29, 3
      %p308 = por %p306, %p307
      %p309 = scmp.ne.s32.totalorder %s301, %s304
      %p310 = scmp.eq.s32.totalorder %s29, 0
      %p311 = por %p309, %p310
      %p312 = scmp.ne.s32.totalorder %s301, %s304
      %p313 = scmp.eq.s32.totalorder %s34, 3
      %p314 = por %p312, %p313
      %p315 = scmp.ne.s32.totalorder %s304, %s305
      %p316 = scmp.eq.s32.totalorder %s34, 0
      %p317 = por %p315, %p316
      %p318 = scmp.ne.s32.totalorder %s304, %s305
      %p319 = scmp.eq.s32.totalorder %s35, 3
      %p320 = por %p318, %p319
      %p322 = scmp.ne.s32.totalorder %s305, %s321
      %p323 = scmp.eq.s32.totalorder %s35, 0
      %p324 = por %p322, %p323
      %s325 = ssub.s32 %s37, %s44
      %p326 = scmp.eq.s32.totalorder %s325, 0
      %s328 = sadd.s32 %s327, 1
      %s329 = scalar_select %p326, %s327, %s328
      %p332 = pneg %p326
      %p333 = scmp.eq.s32.totalorder %s29, 3
      %p334 = por %p332, %p333
      %p335 = scmp.ne.s32.totalorder %s327, %s330
      %p336 = scmp.eq.s32.totalorder %s29, 0
      %p337 = por %p335, %p336
      %p338 = scmp.ne.s32.totalorder %s327, %s330
      %p339 = scmp.eq.s32.totalorder %s34, 3
      %p340 = por %p338, %p339
      %p341 = scmp.ne.s32.totalorder %s330, %s331
      %p342 = scmp.eq.s32.totalorder %s34, 0
      %p343 = por %p341, %p342
      %p344 = scmp.ne.s32.totalorder %s330, %s331
      %p345 = scmp.eq.s32.totalorder %s35, 3
      %p346 = por %p344, %p345
      %p348 = scmp.ne.s32.totalorder %s331, %s347
      %p349 = scmp.eq.s32.totalorder %s35, 0
      %p350 = por %p348, %p349
      %s351 = ssub.s32 %s37, %s44
      %p352 = scmp.eq.s32.totalorder %s351, 0
      %s354 = sadd.s32 %s353, 1
      %s355 = scalar_select %p352, %s353, %s354
      %p358 = pneg %p352
      %p359 = scmp.eq.s32.totalorder %s29, 3
      %p360 = por %p358, %p359
      %p361 = scmp.ne.s32.totalorder %s353, %s356
      %p362 = scmp.eq.s32.totalorder %s29, 0
      %p363 = por %p361, %p362
      %p364 = scmp.ne.s32.totalorder %s353, %s356
      %p365 = scmp.eq.s32.totalorder %s34, 3
      %p366 = por %p364, %p365
      %p367 = scmp.ne.s32.totalorder %s356, %s357
      %p368 = scmp.eq.s32.totalorder %s34, 0
      %p369 = por %p367, %p368
      %p370 = scmp.ne.s32.totalorder %s356, %s357
      %p371 = scmp.eq.s32.totalorder %s35, 3
      %p372 = por %p370, %p371
      %p374 = scmp.ne.s32.totalorder %s357, %s373
      %p375 = scmp.eq.s32.totalorder %s35, 0
      %p376 = por %p374, %p375
      %s377 = ssub.s32 %s37, %s44
      %p378 = scmp.eq.s32.totalorder %s377, 0
      %s380 = sadd.s32 %s379, 1
      %s381 = scalar_select %p378, %s379, %s380
      %p384 = pneg %p378
      %p385 = scmp.eq.s32.totalorder %s29, 3
      %p386 = por %p384, %p385
      %p387 = scmp.ne.s32.totalorder %s379, %s382
      %p388 = scmp.eq.s32.totalorder %s29, 0
      %p389 = por %p387, %p388
      %p390 = scmp.ne.s32.totalorder %s379, %s382
      %p391 = scmp.eq.s32.totalorder %s34, 3
      %p392 = por %p390, %p391
      %p393 = scmp.ne.s32.totalorder %s382, %s383
      %p394 = scmp.eq.s32.totalorder %s34, 0
      %p395 = por %p393, %p394
      %p396 = scmp.ne.s32.totalorder %s382, %s383
      %p397 = scmp.eq.s32.totalorder %s35, 3
      %p398 = por %p396, %p397
      %p400 = scmp.ne.s32.totalorder %s383, %s399
      %p401 = scmp.eq.s32.totalorder %s35, 0
      %p402 = por %p400, %p401
      %s403 = ssub.s32 %s37, %s44
      %p404 = scmp.eq.s32.totalorder %s403, 0
      %s406 = sadd.s32 %s405, 1
      %s407 = scalar_select %p404, %s405, %s406
      %p410 = pneg %p404
      %p411 = scmp.eq.s32.totalorder %s29, 3
      %p412 = por %p410, %p411
      %p413 = scmp.ne.s32.totalorder %s405, %s408
      %p414 = scmp.eq.s32.totalorder %s29, 0
      %p415 = por %p413, %p414
      %p416 = scmp.ne.s32.totalorder %s405, %s408
      %p417 = scmp.eq.s32.totalorder %s34, 3
      %p418 = por %p416, %p417
      %p419 = scmp.ne.s32.totalorder %s408, %s409
      %p420 = scmp.eq.s32.totalorder %s34, 0
      %p421 = por %p419, %p420
      %p422 = scmp.ne.s32.totalorder %s408, %s409
      %p423 = scmp.eq.s32.totalorder %s35, 3
      %p424 = por %p422, %p423
      %p426 = scmp.ne.s32.totalorder %s409, %s425
      %p427 = scmp.eq.s32.totalorder %s35, 0
      %p428 = por %p426, %p427
      %s429 = ssub.s32 %s37, %s44
      %p430 = scmp.eq.s32.totalorder %s429, 0
      %s432 = sadd.s32 %s431, 1
      %s433 = scalar_select %p430, %s431, %s432
      %p436 = pneg %p430
      %p437 = scmp.eq.s32.totalorder %s29, 3
      %p438 = por %p436, %p437
      %p439 = scmp.ne.s32.totalorder %s431, %s434
      %p440 = scmp.eq.s32.totalorder %s29, 0
      %p441 = por %p439, %p440
      %p442 = scmp.ne.s32.totalorder %s431, %s434
      %p443 = scmp.eq.s32.totalorder %s34, 3
      %p444 = por %p442, %p443
      %p445 = scmp.ne.s32.totalorder %s434, %s435
      %p446 = scmp.eq.s32.totalorder %s34, 0
      %p447 = por %p445, %p446
      %p448 = scmp.ne.s32.totalorder %s434, %s435
      %p449 = scmp.eq.s32.totalorder %s35, 3
      %p450 = por %p448, %p449
      %p452 = scmp.ne.s32.totalorder %s435, %s451
      %p453 = scmp.eq.s32.totalorder %s35, 0
      %p454 = por %p452, %p453
      %s455 = ssub.s32 %s36, %s48
      %p456 = scmp.eq.s32.totalorder %s455, 0
      %s458 = sadd.s32 %s457, 1
      %s459 = scalar_select %p456, %s457, %s458
      %p462 = pneg %p456
      %p463 = scmp.eq.s32.totalorder %s29, 3
      %p464 = por %p462, %p463
      %p465 = scmp.ne.s32.totalorder %s457, %s460
      %p466 = scmp.eq.s32.totalorder %s29, 0
      %p467 = por %p465, %p466
      %p468 = scmp.ne.s32.totalorder %s457, %s460
      %p469 = scmp.eq.s32.totalorder %s34, 3
      %p470 = por %p468, %p469
      %p471 = scmp.ne.s32.totalorder %s460, %s461
      %p472 = scmp.eq.s32.totalorder %s34, 0
      %p473 = por %p471, %p472
      %p474 = scmp.ne.s32.totalorder %s460, %s461
      %p475 = scmp.eq.s32.totalorder %s35, 3
      %p476 = por %p474, %p475
      %p478 = scmp.ne.s32.totalorder %s461, %s477
      %p479 = scmp.eq.s32.totalorder %s35, 0
      %p480 = por %p478, %p479
      %p481 = scmp.le.s32.totalorder 1, %s29
      %p482 = scmp.lt.s32.totalorder %s29, 5
      %p483 = pnand %p481, %p482
      %p484 = pneg %p483
      // Predicated region
      $region9: #{tpu_custom_call.1} parent=5 // pred_check
        _
      $region10: #{tpu_custom_call.1} parent=5 // pred_check_branch
        %486 = sbr.rel (%p483) target = $region12
      $region11: #{tpu_custom_call.1} parent=5 // pred_region
        %s487 = ssub.s32 %s29, 1
        // Predicated region
        $region13: #{tpu_custom_call.1} parent=11 // pred_check
          %p488 = pneg %p114
        $region14: #{tpu_custom_call.1} parent=11 // pred_check_branch
          %490 = sbr.rel (%p488) target = $region16
        $region15: #{tpu_custom_call.1} parent=11 // pred_region
          _
        $region16: #{tpu_custom_call.1} parent=11 // pred_fallthru
          _
        // Predicated region
        $region17: #{tpu_custom_call.1} parent=11 // pred_check
          %p491 = pneg %p135
        $region18: #{tpu_custom_call.1} parent=11 // pred_check_branch
          %493 = sbr.rel (%p491) target = $region20
        $region19: #{tpu_custom_call.1} parent=11 // pred_region
          %s495 = ssub.s32 16, 16
          %496 = vsyncadd [#allocation6], %s495
          %s498 = sshll.u32 [#allocation5], 4
          %s499 = int_to_ptr.vmem [resolvable:$true] %s498
          %501 = dma.hbm_to_vmem [thread:$0]  %s3, 16, %s499, [#allocation6]
        $region20: #{tpu_custom_call.1} parent=11 // pred_fallthru
          _
      $region12: #{tpu_custom_call.1} parent=5 // pred_fallthru
        _
      %p502 = scmp.lt.s32.totalorder %s29, 4
      // Predicated region
      $region21: #{tpu_custom_call.1} parent=5 // pred_check
        %p503 = pneg %p502
      $region22: #{tpu_custom_call.1} parent=5 // pred_check_branch
        %505 = sbr.rel (%p503) target = $region24
      $region23: #{tpu_custom_call.1} parent=5 // pred_region
        // Predicated region
        $region25: #{tpu_custom_call.1} parent=23 // pred_check
          %p506 = pneg %p61
        $region26: #{tpu_custom_call.1} parent=23 // pred_check_branch
          %508 = sbr.rel (%p506) target = $region28
        $region27: #{tpu_custom_call.1} parent=23 // pred_region
          %s509 = sand.u32 %s51, 1
          %s510 = scalar_lea.sflag [#allocation3], %s509
          %s511 = sand.u32 %s51, 1
          %s512 = smul.addr %s511, 8
          %s513 = scalar_lea.vmem [#allocation2], %s512
          %s515 = ssub.s32 128, 128
          %516 = vsyncadd %s510, %s515
          %s517 = smul.addr %s36, 128
          %s518 = scalar_lea.hbm %s0, %s517
          %s520 = sshll.u32 %s513, 4
          %s521 = int_to_ptr.vmem [resolvable:$true] %s520
          %523 = dma.hbm_to_vmem [thread:$0]  %s518, 128, %s521, %s510
        $region28: #{tpu_custom_call.1} parent=23 // pred_fallthru
          _
        // Predicated region
        $region29: #{tpu_custom_call.1} parent=23 // pred_check
          %p524 = pneg %p87
        $region30: #{tpu_custom_call.1} parent=23 // pred_check_branch
          %526 = sbr.rel (%p524) target = $region32
        $region31: #{tpu_custom_call.1} parent=23 // pred_region
          %p527 = scmp.lt.s32.totalorder %s36, 1
          %s528 = scalar_select %p527, %s36, 1
          %s529 = scalar_lea.vmem %s1, %s528
        $region32: #{tpu_custom_call.1} parent=23 // pred_fallthru
          _
        // Predicated region
        $region33: #{tpu_custom_call.1} parent=23 // pred_check
          %p530 = pneg %p155
        $region34: #{tpu_custom_call.1} parent=23 // pred_check_branch
          %532 = sbr.rel (%p530) target = $region36
        $region35: #{tpu_custom_call.1} parent=23 // pred_region
          %p533 = scmp.lt.s32.totalorder %s37, 1
          %s534 = scalar_select %p533, %s37, 1
          %s535 = smul.addr %s534, 4
          %s536 = smul.addr %s535, 4
          %s537 = scalar_lea.vmem %s4, %s536
        $region36: #{tpu_custom_call.1} parent=23 // pred_fallthru
          _
        // Predicated region
        $region37: #{tpu_custom_call.1} parent=23 // pred_check
          %p538 = pneg %p181
        $region38: #{tpu_custom_call.1} parent=23 // pred_check_branch
          %540 = sbr.rel (%p538) target = $region40
        $region39: #{tpu_custom_call.1} parent=23 // pred_region
          %p541 = scmp.lt.s32.totalorder %s37, 1
          %s542 = scalar_select %p541, %s37, 1
          %s543 = scalar_lea.vmem %s5, %s542
        $region40: #{tpu_custom_call.1} parent=23 // pred_fallthru
          _
        // Predicated region
        $region41: #{tpu_custom_call.1} parent=23 // pred_check
          %p544 = pneg %p207
        $region42: #{tpu_custom_call.1} parent=23 // pred_check_branch
          %546 = sbr.rel (%p544) target = $region44
        $region43: #{tpu_custom_call.1} parent=23 // pred_region
          %p547 = scmp.lt.s32.totalorder %s37, 1
          %s548 = scalar_select %p547, %s37, 1
          %s549 = smul.addr %s548, 4
          %s550 = smul.addr %s549, 4
          %s551 = scalar_lea.vmem %s6, %s550
        $region44: #{tpu_custom_call.1} parent=23 // pred_fallthru
          _
        // Predicated region
        $region45: #{tpu_custom_call.1} parent=23 // pred_check
          %p552 = pneg %p233
        $region46: #{tpu_custom_call.1} parent=23 // pred_check_branch
          %554 = sbr.rel (%p552) target = $region48
        $region47: #{tpu_custom_call.1} parent=23 // pred_region
          %p555 = scmp.lt.s32.totalorder %s37, 1
          %s556 = scalar_select %p555, %s37, 1
          %s557 = scalar_lea.vmem %s7, %s556
        $region48: #{tpu_custom_call.1} parent=23 // pred_fallthru
          _
        // Predicated region
        $region49: #{tpu_custom_call.1} parent=23 // pred_check
          %p558 = pneg %p259
        $region50: #{tpu_custom_call.1} parent=23 // pred_check_branch
          %560 = sbr.rel (%p558) target = $region52
        $region51: #{tpu_custom_call.1} parent=23 // pred_region
          %p561 = scmp.lt.s32.totalorder %s37, 1
          %s562 = scalar_select %p561, %s37, 1
          %s563 = scalar_lea.vmem %s8, %s562
        $region52: #{tpu_custom_call.1} parent=23 // pred_fallthru
          _
        // Predicated region
        $region53: #{tpu_custom_call.1} parent=23 // pred_check
          %p564 = pneg %p285
        $region54: #{tpu_custom_call.1} parent=23 // pred_check_branch
          %566 = sbr.rel (%p564) target = $region56
        $region55: #{tpu_custom_call.1} parent=23 // pred_region
          %p567 = scmp.lt.s32.totalorder %s37, 1
          %s568 = scalar_select %p567, %s37, 1
          %s569 = scalar_lea.vmem %s9, %s568
        $region56: #{tpu_custom_call.1} parent=23 // pred_fallthru
          _
        // Predicated region
        $region57: #{tpu_custom_call.1} parent=23 // pred_check
          %p570 = pneg %p311
        $region58: #{tpu_custom_call.1} parent=23 // pred_check_branch
          %572 = sbr.rel (%p570) target = $region60
        $region59: #{tpu_custom_call.1} parent=23 // pred_region
          %p573 = scmp.lt.s32.totalorder %s37, 1
          %s574 = scalar_select %p573, %s37, 1
          %s575 = smul.addr %s574, 4
          %s576 = smul.addr %s575, 4
          %s577 = scalar_lea.vmem %s10, %s576
        $region60: #{tpu_custom_call.1} parent=23 // pred_fallthru
          _
        // Predicated region
        $region61: #{tpu_custom_call.1} parent=23 // pred_check
          %p578 = pneg %p337
        $region62: #{tpu_custom_call.1} parent=23 // pred_check_branch
          %580 = sbr.rel (%p578) target = $region64
        $region63: #{tpu_custom_call.1} parent=23 // pred_region
          %p581 = scmp.lt.s32.totalorder %s37, 1
          %s582 = scalar_select %p581, %s37, 1
          %s583 = scalar_lea.vmem %s11, %s582
        $region64: #{tpu_custom_call.1} parent=23 // pred_fallthru
          _
        // Predicated region
        $region65: #{tpu_custom_call.1} parent=23 // pred_check
          %p584 = pneg %p363
        $region66: #{tpu_custom_call.1} parent=23 // pred_check_branch
          %586 = sbr.rel (%p584) target = $region68
        $region67: #{tpu_custom_call.1} parent=23 // pred_region
          %p587 = scmp.lt.s32.totalorder %s37, 1
          %s588 = scalar_select %p587, %s37, 1
          %s589 = smul.addr %s588, 8
          %s590 = smul.addr %s589, 4
          %s591 = scalar_lea.vmem %s12, %s590
        $region68: #{tpu_custom_call.1} parent=23 // pred_fallthru
          _
        // Predicated region
        $region69: #{tpu_custom_call.1} parent=23 // pred_check
          %p592 = pneg %p389
        $region70: #{tpu_custom_call.1} parent=23 // pred_check_branch
          %594 = sbr.rel (%p592) target = $region72
        $region71: #{tpu_custom_call.1} parent=23 // pred_region
          %p595 = scmp.lt.s32.totalorder %s37, 1
          %s596 = scalar_select %p595, %s37, 1
          %s597 = scalar_lea.vmem %s13, %s596
        $region72: #{tpu_custom_call.1} parent=23 // pred_fallthru
          _
        // Predicated region
        $region73: #{tpu_custom_call.1} parent=23 // pred_check
          %p598 = pneg %p415
        $region74: #{tpu_custom_call.1} parent=23 // pred_check_branch
          %600 = sbr.rel (%p598) target = $region76
        $region75: #{tpu_custom_call.1} parent=23 // pred_region
          %p601 = scmp.lt.s32.totalorder %s37, 1
          %s602 = scalar_select %p601, %s37, 1
          %s603 = scalar_lea.vmem %s14, %s602
        $region76: #{tpu_custom_call.1} parent=23 // pred_fallthru
          _
        // Predicated region
        $region77: #{tpu_custom_call.1} parent=23 // pred_check
          %p604 = pneg %p441
        $region78: #{tpu_custom_call.1} parent=23 // pred_check_branch
          %606 = sbr.rel (%p604) target = $region80
        $region79: #{tpu_custom_call.1} parent=23 // pred_region
          %p607 = scmp.lt.s32.totalorder %s37, 1
          %s608 = scalar_select %p607, %s37, 1
          %s609 = scalar_lea.vmem %s15, %s608
        $region80: #{tpu_custom_call.1} parent=23 // pred_fallthru
          _
      $region24: #{tpu_custom_call.1} parent=5 // pred_fallthru
        _
      %p610 = scmp.le.s32.totalorder 1, %s29
      %p611 = scmp.lt.s32.totalorder %s29, 5
      %p612 = pnand %p610, %p611
      %p613 = pneg %p612
      // Predicated region
      $region81: #{tpu_custom_call.1} parent=5 // pred_check
        _
      $region82: #{tpu_custom_call.1} parent=5 // pred_check_branch
        %615 = sbr.rel (%p612) target = $region84
      $region83: #{tpu_custom_call.1} parent=5 // pred_region
        %s616 = ssub.s32 %s29, 1
        %s617 = sand.u32 %s54, 1
        %s618 = scalar_lea.sflag [#allocation3], %s617
        %s619 = sand.u32 %s54, 1
        %s620 = smul.addr %s619, 8
        %s621 = scalar_lea.vmem [#allocation2], %s620
        // Predicated region
        $region85: #{tpu_custom_call.1} parent=83 // pred_check
          %p622 = pneg %p67
        $region86: #{tpu_custom_call.1} parent=83 // pred_check_branch
          %624 = sbr.rel (%p622) target = $region88
        $region87: #{tpu_custom_call.1} parent=83 // pred_region
          %625 = dma.done %s618, 128
        $region88: #{tpu_custom_call.1} parent=83 // pred_fallthru
          _
        // Predicated region
        $region89: #{tpu_custom_call.1} parent=83 // pred_check
          %p626 = pneg %p135
        $region90: #{tpu_custom_call.1} parent=83 // pred_check_branch
          %628 = sbr.rel (%p626) target = $region92
        $region91: #{tpu_custom_call.1} parent=83 // pred_region
          %629 = dma.done [#allocation6], 16
        $region92: #{tpu_custom_call.1} parent=83 // pred_fallthru
          _
        %s630 = sand.u32 %s54, 1
        %s631 = scalar_lea.sflag [#allocation3], %s630
        %s632 = sand.u32 %s54, 1
        %s633 = smul.addr %s632, 8
        %s634 = scalar_lea.vmem [#allocation2], %s633
        %p635 = pneg %p67
        %p636 = pneg %p64
        %p637 = scmp.lt.s32.totalorder %s38, 1
        %s638 = scalar_select %p637, %s38, 1
        %s639 = scalar_lea.vmem %s1, %s638
        %p640 = pneg %p93
        %p641 = pneg %p90
        %p642 = pneg %p114
        %p643 = pneg %p111
        %p644 = pneg %p135
        %p645 = pneg %p132
        %p646 = scmp.lt.s32.totalorder %s39, 1
        %s647 = scalar_select %p646, %s39, 1
        %s648 = smul.addr %s647, 4
        %s649 = smul.addr %s648, 4
        %s650 = scalar_lea.vmem %s4, %s649
        %p651 = pneg %p161
        %p652 = pneg %p158
        %p653 = scmp.lt.s32.totalorder %s39, 1
        %s654 = scalar_select %p653, %s39, 1
        %s655 = scalar_lea.vmem %s5, %s654
        %p656 = pneg %p187
        %p657 = pneg %p184
        %p658 = scmp.lt.s32.totalorder %s39, 1
        %s659 = scalar_select %p658, %s39, 1
        %s660 = smul.addr %s659, 4
        %s661 = smul.addr %s660, 4
        %s662 = scalar_lea.vmem %s6, %s661
        %p663 = pneg %p213
        %p664 = pneg %p210
        %p665 = scmp.lt.s32.totalorder %s39, 1
        %s666 = scalar_select %p665, %s39, 1
        %s667 = scalar_lea.vmem %s7, %s666
        %p668 = pneg %p239
        %p669 = pneg %p236
        %p670 = scmp.lt.s32.totalorder %s39, 1
        %s671 = scalar_select %p670, %s39, 1
        %s672 = scalar_lea.vmem %s8, %s671
        %p673 = pneg %p265
        %p674 = pneg %p262
        %p675 = scmp.lt.s32.totalorder %s39, 1
        %s676 = scalar_select %p675, %s39, 1
        %s677 = scalar_lea.vmem %s9, %s676
        %p678 = pneg %p291
        %p679 = pneg %p288
        %p680 = scmp.lt.s32.totalorder %s39, 1
        %s681 = scalar_select %p680, %s39, 1
        %s682 = smul.addr %s681, 4
        %s683 = smul.addr %s682, 4
        %s684 = scalar_lea.vmem %s10, %s683
        %p685 = pneg %p317
        %p686 = pneg %p314
        %p687 = scmp.lt.s32.totalorder %s39, 1
        %s688 = scalar_select %p687, %s39, 1
        %s689 = scalar_lea.vmem %s11, %s688
        %p690 = pneg %p343
        %p691 = pneg %p340
        %p692 = scmp.lt.s32.totalorder %s39, 1
        %s693 = scalar_select %p692, %s39, 1
        %s694 = smul.addr %s693, 8
        %s695 = smul.addr %s694, 4
        %s696 = scalar_lea.vmem %s12, %s695
        %p697 = pneg %p369
        %p698 = pneg %p366
        %p699 = scmp.lt.s32.totalorder %s39, 1
        %s700 = scalar_select %p699, %s39, 1
        %s701 = scalar_lea.vmem %s13, %s700
        %p702 = pneg %p395
        %p703 = pneg %p392
        %p704 = scmp.lt.s32.totalorder %s39, 1
        %s705 = scalar_select %p704, %s39, 1
        %s706 = scalar_lea.vmem %s14, %s705
        %p707 = pneg %p421
        %p708 = pneg %p418
        %p709 = scmp.lt.s32.totalorder %s39, 1
        %s710 = scalar_select %p709, %s39, 1
        %s711 = scalar_lea.vmem %s15, %s710
        %p712 = pneg %p447
        %p713 = pneg %p444
        %p714 = pneg %p473
        %p715 = pneg %p470
        %s716 = sand.u32 %s460, 1
        %s717 = scalar_lea.sflag [#allocation4], %s716
        %s718 = sand.u32 %s460, 1
        %s719 = smul.addr %s718, 8
        %s720 = scalar_lea.vmem [#allocation7], %s719
        %p721 = scmp.lt.s32.totalorder %s38, 1
        %s722 = scalar_select %p721, %s38, 1
        %s723 = scalar_lea.vmem %s1, %s722
        %p724 = scmp.lt.s32.totalorder %s39, 1
        %s725 = scalar_select %p724, %s39, 1
        %s726 = smul.addr %s725, 4
        %s727 = smul.addr %s726, 4
        %s728 = scalar_lea.vmem %s4, %s727
        %p729 = scmp.lt.s32.totalorder %s39, 1
        %s730 = scalar_select %p729, %s39, 1
        %s731 = scalar_lea.vmem %s5, %s730
        %p732 = scmp.lt.s32.totalorder %s39, 1
        %s733 = scalar_select %p732, %s39, 1
        %s734 = smul.addr %s733, 4
        %s735 = smul.addr %s734, 4
        %s736 = scalar_lea.vmem %s6, %s735
        %p737 = scmp.lt.s32.totalorder %s39, 1
        %s738 = scalar_select %p737, %s39, 1
        %s739 = scalar_lea.vmem %s7, %s738
        %p740 = scmp.lt.s32.totalorder %s39, 1
        %s741 = scalar_select %p740, %s39, 1
        %s742 = scalar_lea.vmem %s8, %s741
        %p743 = scmp.lt.s32.totalorder %s39, 1
        %s744 = scalar_select %p743, %s39, 1
        %s745 = scalar_lea.vmem %s9, %s744
        %p746 = scmp.lt.s32.totalorder %s39, 1
        %s747 = scalar_select %p746, %s39, 1
        %s748 = smul.addr %s747, 4
        %s749 = smul.addr %s748, 4
        %s750 = scalar_lea.vmem %s10, %s749
        %p751 = scmp.lt.s32.totalorder %s39, 1
        %s752 = scalar_select %p751, %s39, 1
        %s753 = scalar_lea.vmem %s11, %s752
        %p754 = scmp.lt.s32.totalorder %s39, 1
        %s755 = scalar_select %p754, %s39, 1
        %s756 = smul.addr %s755, 8
        %s757 = smul.addr %s756, 4
        %s758 = scalar_lea.vmem %s12, %s757
        %p759 = scmp.lt.s32.totalorder %s39, 1
        %s760 = scalar_select %p759, %s39, 1
        %s761 = scalar_lea.vmem %s13, %s760
        %p762 = scmp.lt.s32.totalorder %s39, 1
        %s763 = scalar_select %p762, %s39, 1
        %s764 = scalar_lea.vmem %s14, %s763
        %p765 = scmp.lt.s32.totalorder %s39, 1
        %s766 = scalar_select %p765, %s39, 1
        %s767 = scalar_lea.vmem %s15, %s766
        %p769 = scmp.eq.s32.totalorder %s39, 0
        // Predicated region
        $region93: #{tpu_custom_call.1} parent=83 // pred_check
          %p770 = pneg %p769
        $region94: #{tpu_custom_call.1} parent=83 // pred_check_branch
          %772 = sbr.rel (%p770) target = $region96
        $region95: #{tpu_custom_call.1} parent=83 // pred_region
          %v773 = vld [vmem:[%s621] sm:$0xff]
          %v774 = vld [vmem:[%s2] sm:$0x1]
          %v775 = vld [vmem:[#allocation5] sm:$0x1]
          %vm776 = vcmask 261120
          %v777 = vsel %vm776, %v773, 0.0
          %778 = vadd.xlane.f32.xlu0 %v777
          %v779 = vpop.xlane.xlu0 %778
          %v780 = vrcp.pop 32.0
          %v781 = vmul.f32 %v779, %v780
          %v782 = vsub.f32 %v773, %v781
          %v783 = vmul.f32 %v782, %v782
          %v784 = vsel %vm776, %v783, 0.0
          %785 = vadd.xlane.f32.xlu0 %v784
          %v786 = vpop.xlane.xlu0 %785
          %v787 = vmul.f32 %v786, %v780
          %v788 = vadd.f32 %v787, 1e-12
          %v789 = vrsqrt.pop %v788
          %v790 = vmul.f32 %v782, %v789
          %v792 = vlaneseq
          %v793 = vshrl.u32 %v792, 7
          %v794 = vsub.s32 0, %v793
          %v795 = vrot.slane %v774, %v794
          %v797 = vmul.f32 %v790, %v795
          %v799 = vlaneseq
          %v800 = vshrl.u32 %v799, 7
          %v801 = vsub.s32 0, %v800
          %v802 = vrot.slane %v775, %v801
          %v804 = vadd.f32 %v797, %v802
          %805 = vst.msk [vmem:[%s720] sm:$0xff] %vm776, %v804
        $region96: #{tpu_custom_call.1} parent=83 // pred_fallthru
          _
        %v806 = vld [vmem:[%s723] sm:$0x1]
        %vm807 = vcmp.gt.f32.partialorder %v806, 0.5
        %v808 = vsel %vm807, 0.0, -10000.0
        %v809 = vld [vmem:[%s720] sm:$0xff]
        %v810 = vpack.c.bf16 %v809, %v809
        %v811 = vld [vmem:[%s728] sm:$0xf]
        %v812 = vld [vmem:[%s728 + $0x4] sm:$0xf]
        %v813 = vld [vmem:[%s728 + $0x8] sm:$0xf]
        %v814 = vld [vmem:[%s728 + $0xc] sm:$0xf]
        %v815 = vld [vmem:[%s731] sm:$0x1]
        %v817 = vlaneseq
        %v818 = vshrl.u32 %v817, 7
        %v819 = vsub.s32 0, %v818
        %v820 = vrot.slane %v815, %v819
        %v826 = vunpack.c.l.b16 %v811
        %v827 = vunpack.c.l.b16 %v812
        %v828 = vunpack.c.l.b16 %v813
        %v829 = vunpack.c.l.b16 %v814
        %v830 = vpack.c.b16 %v827, %v826
        %v831 = vpack.c.b16 %v829, %v828
        %vm834 = vcmask 261120
        %v836 = vsel %vm834, %v810, 0
        %838 = vmatprep.subr.bf16.mxu0 0
        %839 = vmatpush1.bf16.msra.mxu0 %v830
        %840 = vmatprep.subr.bf16.mxu0 0
        %841 = vmatpush1.bf16.msra.mxu0 %v831
        %842 = vmatprep.subr.bf16.mxu0 0
        %843 = vmatpush1.bf16.msra.mxu0 0
        %844 = vmatprep.subr.bf16.mxu0 0
        %845 = vmatpush1.bf16.msra.mxu0 0
        %846 = vmatprep.subr.bf16.mxu0 0
        %847 = vmatpush1.bf16.msra.mxu0 0
        %848 = vmatprep.subr.bf16.mxu0 0
        %849 = vmatpush1.bf16.msra.mxu0 0
        %850 = vmatprep.subr.bf16.mxu0 0
        %851 = vmatpush1.bf16.msra.mxu0 0
        %852 = vmatprep.subr.bf16.mxu0 0
        %853 = vmatpush1.bf16.msra.mxu0 0
        %854 = vmatprep.subr.bf16.mxu0 0
        %855 = vmatpush1.bf16.msra.mxu0 0
        %856 = vmatprep.subr.bf16.mxu0 0
        %857 = vmatpush1.bf16.msra.mxu0 0
        %858 = vmatprep.subr.bf16.mxu0 0
        %859 = vmatpush1.bf16.msra.mxu0 0
        %860 = vmatprep.subr.bf16.mxu0 0
        %861 = vmatpush1.bf16.msra.mxu0 0
        %862 = vmatprep.subr.bf16.mxu0 0
        %863 = vmatpush1.bf16.msra.mxu0 0
        %864 = vmatprep.subr.bf16.mxu0 0
        %865 = vmatpush1.bf16.msra.mxu0 0
        %866 = vmatprep.subr.bf16.mxu0 0
        %867 = vmatpush1.bf16.msra.mxu0 0
        %868 = vmatprep.subr.bf16.mxu0 0
        %869 = vmatpush1.bf16.msra.mxu0 0
        %870 = vmatprep.mubr.bf16.mxu0 0
        %871 = vmatmul.mubr.bf16.gmra.mrb[0].mxu0 %v836
        %v872 = vpop.f32.mrb[0].mxu0
        %v873 = vadd.f32 %v820, %v872
        %v874 = vpop.f32.mrb[0].mxu0
        %v875 = vpop.f32.mrb[0].mxu0
        %v876 = vpop.f32.mrb[0].mxu0
        %877 = vdwg.mxu0
        %v878 = vmul.f32 %v873, 0.25
        %v879 = vpack.c.bf16 %v878, %v878
        %v880 = vpack.c.bf16 %v873, %v873
        %v882 = vlaneseq
        %v883 = vshrl.u32 %v882, 7
        %v884 = vsub.s32 0, %v883
        %v885 = vrot.slane %v808, %v884
        %888 = vrot.lane.b32.xlu0 %v880, 96
        %v889 = vpop.permute.xlu0 %888
        %vm890 = vcmask 130048
        %v892 = vsel %vm890, %v879, 0
        %v895 = vsel %vm890, %v889, 0
        %897 = vmatprep.subr.bf16.mxu0 0
        %898 = vmatpush1.bf16.xpose.msra.mxu0 %v895
        %899 = vmatprep.subr.bf16.mxu0 0
        %900 = vmatpush1.bf16.xpose.msra.mxu0 0
        %901 = vmatprep.subr.bf16.mxu0 0
        %902 = vmatpush1.bf16.xpose.msra.mxu0 0
        %903 = vmatprep.subr.bf16.mxu0 0
        %904 = vmatpush1.bf16.xpose.msra.mxu0 0
        %905 = vmatprep.subr.bf16.mxu0 0
        %906 = vmatpush1.bf16.xpose.msra.mxu0 0
        %907 = vmatprep.subr.bf16.mxu0 0
        %908 = vmatpush1.bf16.xpose.msra.mxu0 0
        %909 = vmatprep.subr.bf16.mxu0 0
        %910 = vmatpush1.bf16.xpose.msra.mxu0 0
        %911 = vmatprep.subr.bf16.mxu0 0
        %912 = vmatpush1.bf16.xpose.msra.mxu0 0
        %913 = vmatprep.subr.bf16.mxu0 0
        %914 = vmatpush1.bf16.xpose.msra.mxu0 0
        %915 = vmatprep.subr.bf16.mxu0 0
        %916 = vmatpush1.bf16.xpose.msra.mxu0 0
        %917 = vmatprep.subr.bf16.mxu0 0
        %918 = vmatpush1.bf16.xpose.msra.mxu0 0
        %919 = vmatprep.subr.bf16.mxu0 0
        %920 = vmatpush1.bf16.xpose.msra.mxu0 0
        %921 = vmatprep.subr.bf16.mxu0 0
        %922 = vmatpush1.bf16.xpose.msra.mxu0 0
        %923 = vmatprep.subr.bf16.mxu0 0
        %924 = vmatpush1.bf16.xpose.msra.mxu0 0
        %925 = vmatprep.subr.bf16.mxu0 0
        %926 = vmatpush1.bf16.xpose.msra.mxu0 0
        %927 = vmatprep.subr.bf16.mxu0 0
        %928 = vmatpush1.bf16.xpose.msra.mxu0 0
        %929 = vmatprep.mubr.bf16.mxu0 0
        %930 = vmatmul.mubr.bf16.gmra.mrb[0].mxu0 %v892
        %v931 = vpop.f32.mrb[0].mxu0
        %v932 = vadd.f32 %v885, %v931
        %v933 = vpop.f32.mrb[0].mxu0
        %v934 = vpop.f32.mrb[0].mxu0
        %v935 = vpop.f32.mrb[0].mxu0
        %936 = vdwg.mxu0
        %vm937 = vcmask 64512
        %v938 = vsel %vm937, %v932, -inf
        %939 = vmax.xlane.f32.xlu0 %v938
        %v940 = vpop.xlane.xlu0 %939
        %v941 = vsub.f32 %v932, %v940
        %v942 = vmul.f32 %v941, 1.442695
        %v943 = vpow.pop %v942
        %v944 = vsel %vm937, %v943, 0.0
        %945 = vadd.xlane.f32.xlu0 %v944
        %v946 = vpop.xlane.xlu0 %945
        %v947 = vrcp.pop %v946
        %v948 = vmul.f32 %v943, %v947
        %v949 = vpack.c.bf16 %v948, %v948
        %950 = vrot.lane.b32.xlu0 %v880, 64
        %v951 = vpop.permute.xlu0 %950
        %v953 = vsel %vm937, %v949, 0
        %vm955 = vcmask 1043456
        %v957 = vsel %vm955, %v951, 0
        %959 = vmatprep.subr.bf16.mxu0 0
        %960 = vmatpush1.bf16.msra.mxu0 %v957
        %961 = vmatprep.subr.bf16.mxu0 0
        %962 = vmatpush1.bf16.msra.mxu0 0
        %963 = vmatprep.subr.bf16.mxu0 0
        %964 = vmatpush1.bf16.msra.mxu0 0
        %965 = vmatprep.subr.bf16.mxu0 0
        %966 = vmatpush1.bf16.msra.mxu0 0
        %967 = vmatprep.subr.bf16.mxu0 0
        %968 = vmatpush1.bf16.msra.mxu0 0
        %969 = vmatprep.subr.bf16.mxu0 0
        %970 = vmatpush1.bf16.msra.mxu0 0
        %971 = vmatprep.subr.bf16.mxu0 0
        %972 = vmatpush1.bf16.msra.mxu0 0
        %973 = vmatprep.subr.bf16.mxu0 0
        %974 = vmatpush1.bf16.msra.mxu0 0
        %975 = vmatprep.subr.bf16.mxu0 0
        %976 = vmatpush1.bf16.msra.mxu0 0
        %977 = vmatprep.subr.bf16.mxu0 0
        %978 = vmatpush1.bf16.msra.mxu0 0
        %979 = vmatprep.subr.bf16.mxu0 0
        %980 = vmatpush1.bf16.msra.mxu0 0
        %981 = vmatprep.subr.bf16.mxu0 0
        %982 = vmatpush1.bf16.msra.mxu0 0
        %983 = vmatprep.subr.bf16.mxu0 0
        %984 = vmatpush1.bf16.msra.mxu0 0
        %985 = vmatprep.subr.bf16.mxu0 0
        %986 = vmatpush1.bf16.msra.mxu0 0
        %987 = vmatprep.subr.bf16.mxu0 0
        %988 = vmatpush1.bf16.msra.mxu0 0
        %989 = vmatprep.subr.bf16.mxu0 0
        %990 = vmatpush1.bf16.msra.mxu0 0
        %991 = vmatprep.mubr.bf16.mxu0 0
        %992 = vmatmul.mubr.bf16.gmra.mrb[0].mxu0 %v953
        %v993 = vpop.f32.mrb[0].mxu0
        %v994 = vadd.f32 0.0, %v993
        %v995 = vpop.f32.mrb[0].mxu0
        %v996 = vpop.f32.mrb[0].mxu0
        %v997 = vpop.f32.mrb[0].mxu0
        %998 = vdwg.mxu0
        %1000 = vrot.lane.b32.xlu0 %v879, 112
        %v1001 = vpop.permute.xlu0 %1000
        %1002 = vrot.lane.b32.xlu0 %v880, 80
        %v1003 = vpop.permute.xlu0 %1002
        %v1005 = vsel %vm890, %v1001, 0
        %v1008 = vsel %vm890, %v1003, 0
        %1010 = vmatprep.subr.bf16.mxu0 0
        %1011 = vmatpush1.bf16.xpose.msra.mxu0 %v1008
        %1012 = vmatprep.subr.bf16.mxu0 0
        %1013 = vmatpush1.bf16.xpose.msra.mxu0 0
        %1014 = vmatprep.subr.bf16.mxu0 0
        %1015 = vmatpush1.bf16.xpose.msra.mxu0 0
        %1016 = vmatprep.subr.bf16.mxu0 0
        %1017 = vmatpush1.bf16.xpose.msra.mxu0 0
        %1018 = vmatprep.subr.bf16.mxu0 0
        %1019 = vmatpush1.bf16.xpose.msra.mxu0 0
        %1020 = vmatprep.subr.bf16.mxu0 0
        %1021 = vmatpush1.bf16.xpose.msra.mxu0 0
        %1022 = vmatprep.subr.bf16.mxu0 0
        %1023 = vmatpush1.bf16.xpose.msra.mxu0 0
        %1024 = vmatprep.subr.bf16.mxu0 0
        %1025 = vmatpush1.bf16.xpose.msra.mxu0 0
        %1026 = vmatprep.subr.bf16.mxu0 0
        %1027 = vmatpush1.bf16.xpose.msra.mxu0 0
        %1028 = vmatprep.subr.bf16.mxu0 0
        %1029 = vmatpush1.bf16.xpose.msra.mxu0 0
        %1030 = vmatprep.subr.bf16.mxu0 0
        %1031 = vmatpush1.bf16.xpose.msra.mxu0 0
        %1032 = vmatprep.subr.bf16.mxu0 0
        %1033 = vmatpush1.bf16.xpose.msra.mxu0 0
        %1034 = vmatprep.subr.bf16.mxu0 0
        %1035 = vmatpush1.bf16.xpose.msra.mxu0 0
        %1036 = vmatprep.subr.bf16.mxu0 0
        %1037 = vmatpush1.bf16.xpose.msra.mxu0 0
        %1038 = vmatprep.subr.bf16.mxu0 0
        %1039 = vmatpush1.bf16.xpose.msra.mxu0 0
        %1040 = vmatprep.subr.bf16.mxu0 0
        %1041 = vmatpush1.bf16.xpose.msra.mxu0 0
        %1042 = vmatprep.mubr.bf16.mxu0 0
        %1043 = vmatmul.mubr.bf16.gmra.mrb[0].mxu0 %v1005
        %v1044 = vpop.f32.mrb[0].mxu0
        %v1045 = vadd.f32 %v885, %v1044
        %v1046 = vpop.f32.mrb[0].mxu0
        %v1047 = vpop.f32.mrb[0].mxu0
        %v1048 = vpop.f32.mrb[0].mxu0
        %1049 = vdwg.mxu0
        %v1050 = vsel %vm937, %v1045, -inf
        %1051 = vmax.xlane.f32.xlu0 %v1050
        %v1052 = vpop.xlane.xlu0 %1051
        %v1053 = vsub.f32 %v1045, %v1052
        %v1054 = vmul.f32 %v1053, 1.442695
        %v1055 = vpow.pop %v1054
        %v1056 = vsel %vm937, %v1055, 0.0
        %1057 = vadd.xlane.f32.xlu0 %v1056
        %v1058 = vpop.xlane.xlu0 %1057
        %v1059 = vrcp.pop %v1058
        %v1060 = vmul.f32 %v1055, %v1059
        %v1061 = vpack.c.bf16 %v1060, %v1060
        %1062 = vrot.lane.b32.xlu0 %v880, 48
        %v1063 = vpop.permute.xlu0 %1062
        %v1065 = vsel %vm937, %v1061, 0
        %v1068 = vsel %vm955, %v1063, 0
        %1070 = vmatprep.subr.bf16.mxu0 0
        %1071 = vmatpush1.bf16.msra.mxu0 %v1068
        %1072 = vmatprep.subr.bf16.mxu0 0
        %1073 = vmatpush1.bf16.msra.mxu0 0
        %1074 = vmatprep.subr.bf16.mxu0 0
        %1075 = vmatpush1.bf16.msra.mxu0 0
        %1076 = vmatprep.subr.bf16.mxu0 0
        %1077 = vmatpush1.bf16.msra.mxu0 0
        %1078 = vmatprep.subr.bf16.mxu0 0
        %1079 = vmatpush1.bf16.msra.mxu0 0
        %1080 = vmatprep.subr.bf16.mxu0 0
        %1081 = vmatpush1.bf16.msra.mxu0 0
        %1082 = vmatprep.subr.bf16.mxu0 0
        %1083 = vmatpush1.bf16.msra.mxu0 0
        %1084 = vmatprep.subr.bf16.mxu0 0
        %1085 = vmatpush1.bf16.msra.mxu0 0
        %1086 = vmatprep.subr.bf16.mxu0 0
        %1087 = vmatpush1.bf16.msra.mxu0 0
        %1088 = vmatprep.subr.bf16.mxu0 0
        %1089 = vmatpush1.bf16.msra.mxu0 0
        %1090 = vmatprep.subr.bf16.mxu0 0
        %1091 = vmatpush1.bf16.msra.mxu0 0
        %1092 = vmatprep.subr.bf16.mxu0 0
        %1093 = vmatpush1.bf16.msra.mxu0 0
        %1094 = vmatprep.subr.bf16.mxu0 0
        %1095 = vmatpush1.bf16.msra.mxu0 0
        %1096 = vmatprep.subr.bf16.mxu0 0
        %1097 = vmatpush1.bf16.msra.mxu0 0
        %1098 = vmatprep.subr.bf16.mxu0 0
        %1099 = vmatpush1.bf16.msra.mxu0 0
        %1100 = vmatprep.subr.bf16.mxu0 0
        %1101 = vmatpush1.bf16.msra.mxu0 0
        %1102 = vmatprep.mubr.bf16.mxu0 0
        %1103 = vmatmul.mubr.bf16.gmra.mrb[0].mxu0 %v1065
        %v1104 = vpop.f32.mrb[0].mxu0
        %v1105 = vadd.f32 0.0, %v1104
        %v1106 = vpop.f32.mrb[0].mxu0
        %v1107 = vpop.f32.mrb[0].mxu0
        %v1108 = vpop.f32.mrb[0].mxu0
        %1109 = vdwg.mxu0
        %1111 = vrot.lane.b32.xlu0 %v1105, 16
        %v1112 = vpop.permute.xlu0 %1111
        %v1114 = vsel %vm890, %v994, %v1112
        %v1115 = vpack.c.bf16 %v1114, %v1114
        %v1116 = vld [vmem:[%s736] sm:$0xf]
        %v1117 = vld [vmem:[%s736 + $0x4] sm:$0xf]
        %v1118 = vld [vmem:[%s736 + $0x8] sm:$0xf]
        %v1119 = vld [vmem:[%s736 + $0xc] sm:$0xf]
        %v1120 = vld [vmem:[%s739] sm:$0x1]
        %v1122 = vlaneseq
        %v1123 = vshrl.u32 %v1122, 7
        %v1124 = vsub.s32 0, %v1123
        %v1125 = vrot.slane %v1120, %v1124
        %v1131 = vunpack.c.l.b16 %v1116
        %v1132 = vunpack.c.l.b16 %v1117
        %v1133 = vunpack.c.l.b16 %v1118
        %v1134 = vunpack.c.l.b16 %v1119
        %v1135 = vpack.c.b16 %v1132, %v1131
        %v1136 = vpack.c.b16 %v1134, %v1133
        %v1140 = vsel %vm834, %v1115, 0
        %1142 = vmatprep.subr.bf16.mxu0 0
        %1143 = vmatpush1.bf16.msra.mxu0 %v1135
        %1144 = vmatprep.subr.bf16.mxu0 0
        %1145 = vmatpush1.bf16.msra.mxu0 %v1136
        %1146 = vmatprep.subr.bf16.mxu0 0
        %1147 = vmatpush1.bf16.msra.mxu0 0
        %1148 = vmatprep.subr.bf16.mxu0 0
        %1149 = vmatpush1.bf16.msra.mxu0 0
        %1150 = vmatprep.subr.bf16.mxu0 0
        %1151 = vmatpush1.bf16.msra.mxu0 0
        %1152 = vmatprep.subr.bf16.mxu0 0
        %1153 = vmatpush1.bf16.msra.mxu0 0
        %1154 = vmatprep.subr.bf16.mxu0 0
        %1155 = vmatpush1.bf16.msra.mxu0 0
        %1156 = vmatprep.subr.bf16.mxu0 0
        %1157 = vmatpush1.bf16.msra.mxu0 0
        %1158 = vmatprep.subr.bf16.mxu0 0
        %1159 = vmatpush1.bf16.msra.mxu0 0
        %1160 = vmatprep.subr.bf16.mxu0 0
        %1161 = vmatpush1.bf16.msra.mxu0 0
        %1162 = vmatprep.subr.bf16.mxu0 0
        %1163 = vmatpush1.bf16.msra.mxu0 0
        %1164 = vmatprep.subr.bf16.mxu0 0
        %1165 = vmatpush1.bf16.msra.mxu0 0
        %1166 = vmatprep.subr.bf16.mxu0 0
        %1167 = vmatpush1.bf16.msra.mxu0 0
        %1168 = vmatprep.subr.bf16.mxu0 0
        %1169 = vmatpush1.bf16.msra.mxu0 0
        %1170 = vmatprep.subr.bf16.mxu0 0
        %1171 = vmatpush1.bf16.msra.mxu0 0
        %1172 = vmatprep.subr.bf16.mxu0 0
        %1173 = vmatpush1.bf16.msra.mxu0 0
        %1174 = vmatprep.mubr.bf16.mxu0 0
        %1175 = vmatmul.mubr.bf16.gmra.mrb[0].mxu0 %v1140
        %v1176 = vpop.f32.mrb[0].mxu0
        %v1177 = vadd.f32 %v1125, %v1176
        %v1178 = vpop.f32.mrb[0].mxu0
        %v1179 = vpop.f32.mrb[0].mxu0
        %v1180 = vpop.f32.mrb[0].mxu0
        %1181 = vdwg.mxu0
        %v1182 = vadd.f32 %v809, %v1177
        %v1183 = vld [vmem:[%s742] sm:$0x1]
        %v1184 = vld [vmem:[%s745] sm:$0x1]
        %v1185 = vsel %vm834, %v1182, 0.0
        %1186 = vadd.xlane.f32.xlu0 %v1185
        %v1187 = vpop.xlane.xlu0 %1186
        %v1188 = vrcp.pop 32.0
        %v1189 = vmul.f32 %v1187, %v1188
        %v1190 = vsub.f32 %v1182, %v1189
        %v1191 = vmul.f32 %v1190, %v1190
        %v1192 = vsel %vm834, %v1191, 0.0
        %1193 = vadd.xlane.f32.xlu0 %v1192
        %v1194 = vpop.xlane.xlu0 %1193
        %v1195 = vmul.f32 %v1194, %v1188
        %v1196 = vadd.f32 %v1195, 1e-12
        %v1197 = vrsqrt.pop %v1196
        %v1198 = vmul.f32 %v1190, %v1197
        %v1200 = vlaneseq
        %v1201 = vshrl.u32 %v1200, 7
        %v1202 = vsub.s32 0, %v1201
        %v1203 = vrot.slane %v1183, %v1202
        %v1205 = vmul.f32 %v1198, %v1203
        %v1207 = vlaneseq
        %v1208 = vshrl.u32 %v1207, 7
        %v1209 = vsub.s32 0, %v1208
        %v1210 = vrot.slane %v1184, %v1209
        %v1212 = vadd.f32 %v1205, %v1210
        %v1213 = vpack.c.bf16 %v1212, %v1212
        %v1214 = vld [vmem:[%s750] sm:$0xf]
        %v1215 = vld [vmem:[%s750 + $0x4] sm:$0xf]
        %v1216 = vld [vmem:[%s750 + $0x8] sm:$0xf]
        %v1217 = vld [vmem:[%s750 + $0xc] sm:$0xf]
        %v1218 = vld [vmem:[%s753] sm:$0x1]
        %v1220 = vlaneseq
        %v1221 = vshrl.u32 %v1220, 7
        %v1222 = vsub.s32 0, %v1221
        %v1223 = vrot.slane %v1218, %v1222
        %v1229 = vunpack.c.l.b16 %v1214
        %v1230 = vunpack.c.l.b16 %v1215
        %v1231 = vunpack.c.l.b16 %v1216
        %v1232 = vunpack.c.l.b16 %v1217
        %v1233 = vpack.c.b16 %v1230, %v1229
        %v1234 = vpack.c.b16 %v1232, %v1231
        %v1238 = vsel %vm834, %v1213, 0
        %1240 = vmatprep.subr.bf16.mxu0 0
        %1241 = vmatpush1.bf16.msra.mxu0 %v1233
        %1242 = vmatprep.subr.bf16.mxu0 0
        %1243 = vmatpush1.bf16.msra.mxu0 %v1234
        %1244 = vmatprep.subr.bf16.mxu0 0
        %1245 = vmatpush1.bf16.msra.mxu0 0
        %1246 = vmatprep.subr.bf16.mxu0 0
        %1247 = vmatpush1.bf16.msra.mxu0 0
        %1248 = vmatprep.subr.bf16.mxu0 0
        %1249 = vmatpush1.bf16.msra.mxu0 0
        %1250 = vmatprep.subr.bf16.mxu0 0
        %1251 = vmatpush1.bf16.msra.mxu0 0
        %1252 = vmatprep.subr.bf16.mxu0 0
        %1253 = vmatpush1.bf16.msra.mxu0 0
        %1254 = vmatprep.subr.bf16.mxu0 0
        %1255 = vmatpush1.bf16.msra.mxu0 0
        %1256 = vmatprep.subr.bf16.mxu0 0
        %1257 = vmatpush1.bf16.msra.mxu0 0
        %1258 = vmatprep.subr.bf16.mxu0 0
        %1259 = vmatpush1.bf16.msra.mxu0 0
        %1260 = vmatprep.subr.bf16.mxu0 0
        %1261 = vmatpush1.bf16.msra.mxu0 0
        %1262 = vmatprep.subr.bf16.mxu0 0
        %1263 = vmatpush1.bf16.msra.mxu0 0
        %1264 = vmatprep.subr.bf16.mxu0 0
        %1265 = vmatpush1.bf16.msra.mxu0 0
        %1266 = vmatprep.subr.bf16.mxu0 0
        %1267 = vmatpush1.bf16.msra.mxu0 0
        %1268 = vmatprep.subr.bf16.mxu0 0
        %1269 = vmatpush1.bf16.msra.mxu0 0
        %1270 = vmatprep.subr.bf16.mxu0 0
        %1271 = vmatpush1.bf16.msra.mxu0 0
        %1272 = vmatprep.mubr.bf16.mxu0 0
        %1273 = vmatmul.mubr.bf16.gmra.mrb[0].mxu0 %v1238
        %v1274 = vpop.f32.mrb[0].mxu0
        %v1275 = vadd.f32 %v1223, %v1274
        %v1276 = vpop.f32.mrb[0].mxu0
        %v1277 = vpop.f32.mrb[0].mxu0
        %v1278 = vpop.f32.mrb[0].mxu0
        %1279 = vdwg.mxu0
        %v1280 = vmul.f32 %v1275, 0.70710677
        %v1281 = vand.u32 2147483647, %v1280
        %v1282 = vmul.f32 %v1281, 0.3275911
        %v1283 = vadd.f32 %v1282, 1.0
        %v1284 = vrcp.pop %v1283
        %v1285 = vmul.f32 1.0, %v1284
        %v1286 = vmul.f32 %v1285, 1.0614054
        %v1287 = vsub.f32 %v1286, 1.4531521
        %v1288 = vmul.f32 %v1287, %v1285
        %v1289 = vadd.f32 %v1288, 1.4214138
        %v1290 = vmul.f32 %v1289, %v1285
        %v1291 = vsub.f32 %v1290, 0.28449672
        %v1292 = vmul.f32 %v1291, %v1285
        %v1293 = vadd.f32 %v1292, 0.2548296
        %v1294 = vmul.f32 %v1293, %v1285
        %v1295 = vsub.f32 0.0, %v1281
        %v1296 = vmul.f32 %v1295, %v1281
        %v1297 = vmul.f32 %v1296, 1.442695
        %v1298 = vpow.pop %v1297
        %v1299 = vmul.f32 %v1294, %v1298
        %v1300 = vsub.f32 1.0, %v1299
        %vm1301 = vcmp.ge.f32.partialorder %v1280, 0.0
        %v1302 = vsub.f32 0.0, %v1300
        %v1303 = vsel %vm1301, %v1300, %v1302
        %v1304 = vmul.f32 %v1275, 0.5
        %v1305 = vadd.f32 %v1303, 1.0
        %v1306 = vmul.f32 %v1304, %v1305
        %v1307 = vpack.c.bf16 %v1306, %v1306
        %v1308 = vld [vmem:[%s758] sm:$0xf]
        %v1309 = vld [vmem:[%s758 + $0x4] sm:$0xf]
        %v1310 = vld [vmem:[%s758 + $0x8] sm:$0xf]
        %v1311 = vld [vmem:[%s758 + $0xc] sm:$0xf]
        %v1312 = vld [vmem:[%s758 + $0x10] sm:$0xf]
        %v1313 = vld [vmem:[%s758 + $0x14] sm:$0xf]
        %v1314 = vld [vmem:[%s758 + $0x18] sm:$0xf]
        %v1315 = vld [vmem:[%s758 + $0x1c] sm:$0xf]
        %v1316 = vld [vmem:[%s761] sm:$0x1]
        %v1318 = vlaneseq
        %v1319 = vshrl.u32 %v1318, 7
        %v1320 = vsub.s32 0, %v1319
        %v1321 = vrot.slane %v1316, %v1320
        %v1331 = vunpack.c.l.b16 %v1308
        %v1332 = vunpack.c.l.b16 %v1309
        %v1333 = vunpack.c.l.b16 %v1310
        %v1334 = vunpack.c.l.b16 %v1311
        %v1335 = vunpack.c.l.b16 %v1312
        %v1336 = vunpack.c.l.b16 %v1313
        %v1337 = vunpack.c.l.b16 %v1314
        %v1338 = vunpack.c.l.b16 %v1315
        %v1339 = vpack.c.b16 %v1332, %v1331
        %v1340 = vpack.c.b16 %v1334, %v1333
        %v1341 = vpack.c.b16 %v1336, %v1335
        %v1342 = vpack.c.b16 %v1338, %v1337
        %vm1347 = vcmask 523264
        %v1349 = vsel %vm1347, %v1307, 0
        %1351 = vmatprep.subr.bf16.mxu0 0
        %1352 = vmatpush1.bf16.msra.mxu0 %v1339
        %1353 = vmatprep.subr.bf16.mxu0 0
        %1354 = vmatpush1.bf16.msra.mxu0 %v1340
        %1355 = vmatprep.subr.bf16.mxu0 0
        %1356 = vmatpush1.bf16.msra.mxu0 %v1341
        %1357 = vmatprep.subr.bf16.mxu0 0
        %1358 = vmatpush1.bf16.msra.mxu0 %v1342
        %1359 = vmatprep.subr.bf16.mxu0 0
        %1360 = vmatpush1.bf16.msra.mxu0 0
        %1361 = vmatprep.subr.bf16.mxu0 0
        %1362 = vmatpush1.bf16.msra.mxu0 0
        %1363 = vmatprep.subr.bf16.mxu0 0
        %1364 = vmatpush1.bf16.msra.mxu0 0
        %1365 = vmatprep.subr.bf16.mxu0 0
        %1366 = vmatpush1.bf16.msra.mxu0 0
        %1367 = vmatprep.subr.bf16.mxu0 0
        %1368 = vmatpush1.bf16.msra.mxu0 0
        %1369 = vmatprep.subr.bf16.mxu0 0
        %1370 = vmatpush1.bf16.msra.mxu0 0
        %1371 = vmatprep.subr.bf16.mxu0 0
        %1372 = vmatpush1.bf16.msra.mxu0 0
        %1373 = vmatprep.subr.bf16.mxu0 0
        %1374 = vmatpush1.bf16.msra.mxu0 0
        %1375 = vmatprep.subr.bf16.mxu0 0
        %1376 = vmatpush1.bf16.msra.mxu0 0
        %1377 = vmatprep.subr.bf16.mxu0 0
        %1378 = vmatpush1.bf16.msra.mxu0 0
        %1379 = vmatprep.subr.bf16.mxu0 0
        %1380 = vmatpush1.bf16.msra.mxu0 0
        %1381 = vmatprep.subr.bf16.mxu0 0
        %1382 = vmatpush1.bf16.msra.mxu0 0
        %1383 = vmatprep.mubr.bf16.mxu0 0
        %1384 = vmatmul.mubr.bf16.gmra.mrb[0].mxu0 %v1349
        %v1385 = vpop.f32.mrb[0].mxu0
        %v1386 = vadd.f32 %v1321, %v1385
        %v1387 = vpop.f32.mrb[0].mxu0
        %v1388 = vpop.f32.mrb[0].mxu0
        %v1389 = vpop.f32.mrb[0].mxu0
        %1390 = vdwg.mxu0
        %v1391 = vadd.f32 %v1212, %v1386
        %v1392 = vld [vmem:[%s764] sm:$0x1]
        %v1393 = vld [vmem:[%s767] sm:$0x1]
        %v1394 = vsel %vm834, %v1391, 0.0
        %1395 = vadd.xlane.f32.xlu0 %v1394
        %v1396 = vpop.xlane.xlu0 %1395
        %v1397 = vmul.f32 %v1396, %v1188
        %v1398 = vsub.f32 %v1391, %v1397
        %v1399 = vmul.f32 %v1398, %v1398
        %v1400 = vsel %vm834, %v1399, 0.0
        %1401 = vadd.xlane.f32.xlu0 %v1400
        %v1402 = vpop.xlane.xlu0 %1401
        %v1403 = vmul.f32 %v1402, %v1188
        %v1404 = vadd.f32 %v1403, 1e-12
        %v1405 = vrsqrt.pop %v1404
        %v1406 = vmul.f32 %v1398, %v1405
        %v1408 = vlaneseq
        %v1409 = vshrl.u32 %v1408, 7
        %v1410 = vsub.s32 0, %v1409
        %v1411 = vrot.slane %v1392, %v1410
        %v1413 = vmul.f32 %v1406, %v1411
        %v1415 = vlaneseq
        %v1416 = vshrl.u32 %v1415, 7
        %v1417 = vsub.s32 0, %v1416
        %v1418 = vrot.slane %v1393, %v1417
        %v1420 = vadd.f32 %v1413, %v1418
        %1421 = vst.msk [vmem:[%s720] sm:$0xff] %vm834, %v1420
        %s1422 = sand.u32 %s460, 1
        %s1423 = scalar_lea.sflag [#allocation4], %s1422
        %s1424 = sand.u32 %s460, 1
        %s1425 = smul.addr %s1424, 8
        %s1426 = scalar_lea.vmem [#allocation7], %s1425
        // Predicated region
        $region97: #{tpu_custom_call.1} parent=83 // pred_check
          %p1427 = pneg %p470
        $region98: #{tpu_custom_call.1} parent=83 // pred_check_branch
          %1429 = sbr.rel (%p1427) target = $region100
        $region99: #{tpu_custom_call.1} parent=83 // pred_region
          %s1431 = ssub.s32 128, 128
          %1432 = vsyncadd %s1423, %s1431
          %s1433 = smul.addr %s38, 128
          %s1434 = scalar_lea.hbm %s16, %s1433
          %s1436 = sshll.u32 %s1426, 4
          %s1437 = int_to_ptr.vmem [resolvable:$true] %s1436
          %1439 = dma.vmem_to_hbm [thread:$0]  %s1437, 128, %s1434, %s1423
        $region100: #{tpu_custom_call.1} parent=83 // pred_fallthru
          _
      $region84: #{tpu_custom_call.1} parent=5 // pred_fallthru
        _
      %p1440 = scmp.le.s32.totalorder 2, %s29
      // Predicated region
      $region101: #{tpu_custom_call.1} parent=5 // pred_check
        %p1441 = pneg %p1440
      $region102: #{tpu_custom_call.1} parent=5 // pred_check_branch
        %1443 = sbr.rel (%p1441) target = $region104
      $region103: #{tpu_custom_call.1} parent=5 // pred_region
        %s1444 = ssub.s32 %s29, 2
        // Predicated region
        $region105: #{tpu_custom_call.1} parent=103 // pred_check
          %p1445 = pneg %p476
        $region106: #{tpu_custom_call.1} parent=103 // pred_check_branch
          %1447 = sbr.rel (%p1445) target = $region108
        $region107: #{tpu_custom_call.1} parent=103 // pred_region
          %s1448 = sand.u32 %s461, 1
          %s1449 = scalar_lea.sflag [#allocation4], %s1448
          %s1450 = sand.u32 %s461, 1
          %s1451 = smul.addr %s1450, 8
          %s1452 = scalar_lea.vmem [#allocation7], %s1451
          %1453 = dma.done %s1449, 128
        $region108: #{tpu_custom_call.1} parent=103 // pred_fallthru
          _
      $region104: #{tpu_custom_call.1} parent=5 // pred_fallthru
        _
    $region6: #{tpu_custom_call.1} parent=1 // loop_footer
      %s33 = sadd.s32 1, %s29
    $region7: #{tpu_custom_call.1} parent=1 // loop_footer_branch
      %28 = sbr.rel target = $region3
    $region8: #{tpu_custom_call.1} parent=1 // loop_exit
      _
    %1454 = vsyncpa [#allocation3], 1
    %s1455 = scalar_lea.sflag [#allocation3], 1
    %1456 = vsyncpa %s1455, 1
    %1457 = vsyncpa [#allocation6], 1
    %1458 = vsyncpa [#allocation4], 1
    %s1459 = scalar_lea.sflag [#allocation4], 1
    %1460 = vsyncpa %s1459, 1

</llo_original>
